<compile_context>
chip_gen: v7x
topology: tpu7x:2x2x1
jax: 0.10.0
libtpu: 0.0.40
codegen_flags: <defaults>
</compile_context>

<pallas_src>
import functools

import jax
import jax.numpy as jnp
from jax.experimental import pallas as pl
from jax.experimental.pallas import tpu as pltpu


def make_divisible(v, divisor=8, min_value=None):
    if min_value is None:
        min_value = divisor
    new_v = max(min_value, int(v + divisor / 2) // divisor * divisor)
    if new_v < 0.9 * v:
        new_v += divisor
    return new_v


_W_OFF = 8  # sublane-aligned left padding for the depthwise scratch


# ------------------------------ fused kernel --------------------------------

def _fused_ir_kernel(*refs, H, W, stride, dilation, h_out, w_out,
                     has_expand, use_res):
    """exp_1x1+BN+LeakyReLU -> dw3x3+BN+LeakyReLU -> red_1x1+BN (+residual),
    one batch element per grid step, hidden activation kept in VMEM."""
    if has_expand:
        (x_ref, exp_w_ref, exp_s_ref, exp_b_ref,
         dw_w_ref, dw_s_ref, dw_b_ref,
         red_w_ref, red_s_ref, red_b_ref,
         o_ref, dw_scr) = refs
    else:
        (x_ref,
         dw_w_ref, dw_s_ref, dw_b_ref,
         red_w_ref, red_s_ref, red_b_ref,
         o_ref, dw_scr) = refs

    hidden = dw_w_ref.shape[1]
    x_cm = x_ref[0].astype(jnp.float32)                     # (Cin, H*W), lane-dense

    # ---- expand 1x1 conv + folded BN + LeakyReLU(0.1), channel-major ----
    if has_expand:
        h_cm = jnp.dot(exp_w_ref[...], x_cm,
                       preferred_element_type=jnp.float32)  # (hidden, H*W)
        h_cm = h_cm * exp_s_ref[...] + exp_b_ref[...]
        h_cm = jnp.where(h_cm >= 0.0, h_cm, 0.1 * h_cm)
    else:
        h_cm = x_cm                                          # hidden == Cin

    # ---- place hidden activation into zero-padded NHWC VMEM scratch ----
    # Scratch layout: (H + 2, W + 2*_W_OFF, hidden); image interior at
    # rows [1, 1+H), cols [_W_OFF, _W_OFF+W)  (sublane-aligned store).
    h_rm = jnp.transpose(h_cm, (1, 0)).reshape(H, W, hidden)  # (H, W, hidden)
    dw_scr[...] = jnp.zeros_like(dw_scr)   # re-zero every step (safe w/ megacore)
    dw_scr[pl.ds(1, H), pl.ds(_W_OFF, W), :] = h_rm
    xp = dw_scr[...]

    # ---- depthwise 3x3 conv + folded BN + LeakyReLU(0.1) ----
    dw_w = dw_w_ref[...]                                      # (9, hidden)
    acc = None
    for kh in range(3):
        for kw in range(3):
            h0 = kh * dilation
            w0 = (_W_OFF - 1) + kw * dilation
            if stride == 1:
                patch = jax.lax.slice(
                    xp, (h0, w0, 0), (h0 + h_out, w0 + w_out, hidden))
            else:
                # TODO(synk): stride-2 path keeps a strided slice; a contiguous
                # slice + reshape subsample would avoid per-tap shuffles.
                patch = jax.lax.slice(
                    xp, (h0, w0, 0),
                    (h0 + (h_out - 1) * stride + 1,
                     w0 + (w_out - 1) * stride + 1, hidden),
                    (stride, stride, 1))
            tap = patch * dw_w[kh * 3 + kw][None, None, :]
            acc = tap if acc is None else acc + tap           # init from first tap

    y = acc.reshape(h_out * w_out, hidden)                    # (M2, hidden)
    y = y * dw_s_ref[...] + dw_b_ref[...]
    y = jnp.where(y >= 0.0, y, 0.1 * y)

    # ---- reduce 1x1 conv + folded BN (+ residual), channel-major output ----
    z = jax.lax.dot_general(red_w_ref[...], y,
                            dimension_numbers=(((1,), (1,)), ((), ())),
                            preferred_element_type=jnp.float32)  # (Cout, M2)
    z = z * red_s_ref[...] + red_b_ref[...]
    if use_res:
        z = z + x_cm                                          # Cin==Cout, M==M2
    o_ref[0] = z.astype(o_ref.dtype)                          # lane-dense store


# ------------------------ parameters & module forward ------------------------

def _fold_bn(bn, eps=1e-5):
    gamma, beta, mean, var = bn
    scale = gamma / jnp.sqrt(var + eps)
    bias = beta - mean * scale
    return scale, bias


def _bn_params(key, c):
    k1, k2, k3, k4 = jax.random.split(key, 4)
    gamma = 1.0 + 0.1 * jax.random.normal(k1, (c,), jnp.float32)
    beta = 0.1 * jax.random.normal(k2, (c,), jnp.float32)
    mean = 0.05 * jax.random.normal(k3, (c,), jnp.float32)
    var = jax.random.uniform(k4, (c,), jnp.float32, minval=0.5, maxval=1.5)
    return (gamma, beta, mean, var)


def init_inverted_residual(key, in_channels, out_channels, expand_ratio):
    hidden = make_divisible(int(round(in_channels * expand_ratio)), 8)
    keys = jax.random.split(key, 6)
    p = {"hidden": hidden}
    if expand_ratio != 1:
        # PyTorch exp_1x1 weight (hidden, in, 1, 1) -> stored (hidden, in)
        p["exp_w"] = 0.1 * jax.random.normal(keys[0], (hidden, in_channels), jnp.float32)
        p["exp_bn"] = _bn_params(keys[1], hidden)
    else:
        assert hidden == in_channels, "expand_ratio==1 requires in_channels % 8 == 0"
    # PyTorch dw weight (hidden, 1, 3, 3) -> stored (9, hidden), row = kh*3+kw
    p["dw_w"] = 0.1 * jax.random.normal(keys[2], (9, hidden), jnp.float32)
    p["dw_bn"] = _bn_params(keys[3], hidden)
    # PyTorch red_1x1 weight (out, hidden, 1, 1) -> stored (out, hidden)
    p["red_w"] = 0.1 * jax.random.normal(keys[4], (out_channels, hidden), jnp.float32)
    p["red_bn"] = _bn_params(keys[5], out_channels)
    return p


def inverted_residual_forward(params, x_nchw, *, in_channels, out_channels,
                              stride, expand_ratio, dilation=1,
                              skip_connection=True, mask=None, mask_block=False):
    use_res = (stride == 1 and in_channels == out_channels and skip_connection)
    n, cin, h, w = x_nchw.shape
    hidden = params["hidden"]
    has_expand = expand_ratio != 1
    pad = 1  # the PyTorch module hardcodes padding=1
    h_out = (h + 2 * pad - dilation * 2 - 1) // stride + 1
    w_out = (w + 2 * pad - dilation * 2 - 1) // stride + 1

    x_cm = x_nchw.reshape(n, cin, h * w)   # channel-major view, free reshape

    operands = [x_cm]
    in_specs = [pl.BlockSpec((1, cin, h * w), lambda b: (b, 0, 0))]
    if has_expand:
        es, eb = _fold_bn(params["exp_bn"])
        operands += [params["exp_w"],
                     es.reshape(hidden, 1).astype(jnp.float32),
                     eb.reshape(hidden, 1).astype(jnp.float32)]
        in_specs += [pl.BlockSpec((hidden, cin), lambda b: (0, 0)),
                     pl.BlockSpec((hidden, 1), lambda b: (0, 0)),
                     pl.BlockSpec((hidden, 1), lambda b: (0, 0))]
    dss, dbb = _fold_bn(params["dw_bn"])
    rs, rb = _fold_bn(params["red_bn"])
    operands += [params["dw_w"],
                 dss.reshape(1, hidden).astype(jnp.float32),
                 dbb.reshape(1, hidden).astype(jnp.float32),
                 params["red_w"],
                 rs.reshape(out_channels, 1).astype(jnp.float32),
                 rb.reshape(out_channels, 1).astype(jnp.float32)]
    in_specs += [pl.BlockSpec((9, hidden), lambda b: (0, 0)),
                 pl.BlockSpec((1, hidden), lambda b: (0, 0)),
                 pl.BlockSpec((1, hidden), lambda b: (0, 0)),
                 pl.BlockSpec((out_channels, hidden), lambda b: (0, 0)),
                 pl.BlockSpec((out_channels, 1), lambda b: (0, 0)),
                 pl.BlockSpec((out_channels, 1), lambda b: (0, 0))]

    kernel = functools.partial(
        _fused_ir_kernel, H=h, W=w, stride=stride, dilation=dilation,
        h_out=h_out, w_out=w_out, has_expand=has_expand, use_res=use_res)

    out = pl.pallas_call(
        kernel,
        out_shape=jax.ShapeDtypeStruct((n, out_channels, h_out * w_out), x_nchw.dtype),
        grid=(n,),
        in_specs=in_specs,
        out_specs=pl.BlockSpec((1, out_channels, h_out * w_out), lambda b: (b, 0, 0)),
        scratch_shapes=[pltpu.VMEM((h + 2 * pad, w + 2 * _W_OFF, hidden), jnp.float32)],
        compiler_params=pltpu.CompilerParams(dimension_semantics=("parallel",)),
    )(*operands)

    out = out.reshape(n, out_channels, h_out, w_out)   # already NCHW, free reshape
    if mask_block and mask is not None:
        out = out * mask  # elementwise glue (broadcast like PyTorch)
    return out


# ------------------------------ pure-JAX reference ---------------------------

def _leaky(x):
    return jnp.where(x >= 0, x, 0.1 * x)


def _bn_apply_nchw(x, bn, eps=1e-5):
    gamma, beta, mean, var = bn
    r = lambda v: v.reshape(1, -1, 1, 1)
    return (x - r(mean)) / jnp.sqrt(r(var) + eps) * r(gamma) + r(beta)


def reference_forward(params, x_nchw, *, in_channels, out_channels, stride,
                      expand_ratio, dilation=1, skip_connection=True):
    use_res = (stride == 1 and in_channels == out_channels and skip_connection)
    hidden = params["hidden"]
    dn = ("NCHW", "OIHW", "NCHW")
    y = x_nchw
    if expand_ratio != 1:
        w = params["exp_w"][:, :, None, None]                      # (hid, in, 1, 1)
        y = jax.lax.conv_general_dilated(y, w, (1, 1), "VALID", dimension_numbers=dn)
        y = _leaky(_bn_apply_nchw(y, params["exp_bn"]))
    wdw = params["dw_w"].T.reshape(hidden, 3, 3)[:, None, :, :]    # (hid, 1, 3, 3)
    y = jax.lax.conv_general_dilated(
        y, wdw, (stride, stride), [(1, 1), (1, 1)],
        rhs_dilation=(dilation, dilation), dimension_numbers=dn,
        feature_group_count=hidden)
    y = _leaky(_bn_apply_nchw(y, params["dw_bn"]))
    wr = params["red_w"][:, :, None, None]                         # (out, hid, 1, 1)
    y = jax.lax.conv_general_dilated(y, wr, (1, 1), "VALID", dimension_numbers=dn)
    y = _bn_apply_nchw(y, params["red_bn"])
    return x_nchw + y if use_res else y


# ---------------------------------- main -------------------------------------

if __name__ == "__main__":
    # Module config: in=16, out=16, stride=1, expand_ratio=2 -> hidden=32,
    # skip connection active (stride==1 and in==out).
    IN_C, OUT_C, STRIDE, EXP, DIL = 16, 16, 1, 2, 1
    N, H, W = 2, 16, 16

    key = jax.random.PRNGKey(0)
    k_param, k_x = jax.random.split(key)
    params = init_inverted_residual(k_param, IN_C, OUT_C, EXP)
    x = jax.random.normal(k_x, (N, IN_C, H, W), jnp.float32)

    out = inverted_residual_forward(
        params, x, in_channels=IN_C, out_channels=OUT_C,
        stride=STRIDE, expand_ratio=EXP, dilation=DIL, skip_connection=True)
    out = jax.block_until_ready(out)

    ref = reference_forward(
        params, x, in_channels=IN_C, out_channels=OUT_C,
        stride=STRIDE, expand_ratio=EXP, dilation=DIL, skip_connection=True)
    ref = jax.block_until_ready(ref)

    assert out.shape == (N, OUT_C, H, W), out.shape
    assert jnp.allclose(out, ref, rtol=1e-4, atol=1e-4), float(jnp.max(jnp.abs(out - ref)))
    print("KERNEL_OK")
</pallas_src>

<mosaic_0001>
module attributes {stable_mosaic.version = 11 : i64} {
  func.func @_fused_ir_kernel(%arg0: i32, %arg1: memref<1x16x256xf32, #tpu.memory_space<vmem>>, %arg2: memref<32x16xf32, #tpu.memory_space<vmem>>, %arg3: memref<32x1xf32, #tpu.memory_space<vmem>>, %arg4: memref<32x1xf32, #tpu.memory_space<vmem>>, %arg5: memref<9x32xf32, #tpu.memory_space<vmem>>, %arg6: memref<1x32xf32, #tpu.memory_space<vmem>>, %arg7: memref<1x32xf32, #tpu.memory_space<vmem>>, %arg8: memref<16x32xf32, #tpu.memory_space<vmem>>, %arg9: memref<16x1xf32, #tpu.memory_space<vmem>>, %arg10: memref<16x1xf32, #tpu.memory_space<vmem>>, %arg11: memref<1x16x256xf32, #tpu.memory_space<vmem>>, %arg12: memref<18x32x32xf32, #tpu.memory_space<vmem>>) attributes {dimension_semantics = [#tpu.dimension_semantics<parallel>], iteration_bounds = array<i64: 2>, scalar_prefetch = 0 : i64, scratch_operands = 1 : i64, tpu.core_type = #tpu.core_type<tc>, window_params = [{transform_indices = @transform_0, window_bounds = array<i64: 1, 16, 256>}, {pipeline_mode = #tpu.pipeline_mode<synchronous>, transform_indices = @transform_1, window_bounds = array<i64: 32, 16>}, {pipeline_mode = #tpu.pipeline_mode<synchronous>, transform_indices = @transform_2, window_bounds = array<i64: 32, 1>}, {pipeline_mode = #tpu.pipeline_mode<synchronous>, transform_indices = @transform_3, window_bounds = array<i64: 32, 1>}, {pipeline_mode = #tpu.pipeline_mode<synchronous>, transform_indices = @transform_4, window_bounds = array<i64: 9, 32>}, {pipeline_mode = #tpu.pipeline_mode<synchronous>, transform_indices = @transform_5, window_bounds = array<i64: 1, 32>}, {pipeline_mode = #tpu.pipeline_mode<synchronous>, transform_indices = @transform_6, window_bounds = array<i64: 1, 32>}, {pipeline_mode = #tpu.pipeline_mode<synchronous>, transform_indices = @transform_7, window_bounds = array<i64: 16, 32>}, {pipeline_mode = #tpu.pipeline_mode<synchronous>, transform_indices = @transform_8, window_bounds = array<i64: 16, 1>}, {pipeline_mode = #tpu.pipeline_mode<synchronous>, transform_indices = @transform_9, window_bounds = array<i64: 16, 1>}, {transform_indices = @transform_10, window_bounds = array<i64: 1, 16, 256>}]} {
    %c0 = arith.constant 0 : index
    %c0_0 = arith.constant 0 : index
    %c0_1 = arith.constant 0 : index
    %0 = vector.load %arg1[%c0, %c0_0, %c0_1] : memref<1x16x256xf32, #tpu.memory_space<vmem>>, vector<1x16x256xf32>
    %1 = vector.shape_cast %0 : vector<1x16x256xf32> to vector<16x256xf32>
    %c0_2 = arith.constant 0 : index
    %c0_3 = arith.constant 0 : index
    %2 = vector.load %arg2[%c0_2, %c0_3] : memref<32x16xf32, #tpu.memory_space<vmem>>, vector<32x16xf32>
    %cst = arith.constant dense<0.000000e+00> : vector<32x256xf32>
    %3 = tpu.matmul %2, %1, %cst {dimension_numbers = #tpu.dot_dimension_numbers<[1], [0], [0], [1], [0, 0, 1, 1], [], []>} : vector<32x16xf32>, vector<16x256xf32>, vector<32x256xf32> -> vector<32x256xf32>
    %c0_4 = arith.constant 0 : index
    %c0_5 = arith.constant 0 : index
    %4 = vector.load %arg3[%c0_4, %c0_5] : memref<32x1xf32, #tpu.memory_space<vmem>>, vector<32x1xf32>
    %5 = vector.broadcast %4 : vector<32x1xf32> to vector<32x256xf32>
    %6 = arith.mulf %3, %5 : vector<32x256xf32>
    %c0_6 = arith.constant 0 : index
    %c0_7 = arith.constant 0 : index
    %7 = vector.load %arg4[%c0_6, %c0_7] : memref<32x1xf32, #tpu.memory_space<vmem>>, vector<32x1xf32>
    %8 = vector.broadcast %7 : vector<32x1xf32> to vector<32x256xf32>
    %9 = arith.addf %6, %8 : vector<32x256xf32>
    %cst_8 = arith.constant 0.000000e+00 : f32
    %10 = vector.broadcast %cst_8 : f32 to vector<32x256xf32>
    %11 = arith.cmpf oge, %9, %10 : vector<32x256xf32>
    %cst_9 = arith.constant 1.000000e-01 : f32
    %12 = vector.broadcast %cst_9 : f32 to vector<32x256xf32>
    %13 = arith.mulf %12, %9 : vector<32x256xf32>
    %14 = arith.select %11, %9, %13 : vector<32x256xi1>, vector<32x256xf32>
    %15 = tpu.transpose %14, [1, 0] : vector<32x256xf32> -> vector<256x32xf32>
    %16 = vector.shape_cast %15 : vector<256x32xf32> to vector<16x16x32xf32>
    %cst_10 = arith.constant 0.000000e+00 : f32
    %17 = vector.broadcast %cst_10 : f32 to vector<18x32x32xf32>
    %c0_11 = arith.constant 0 : index
    %c0_12 = arith.constant 0 : index
    %c0_13 = arith.constant 0 : index
    %18 = vector.load %arg12[%c0_11, %c0_12, %c0_13] : memref<18x32x32xf32, #tpu.memory_space<vmem>>, vector<18x32x32xf32>
    tpu.vector_store %arg12[%c0_11, %c0_12, %c0_13], %17 {strides = array<i32>} : memref<18x32x32xf32, #tpu.memory_space<vmem>>, vector<18x32x32xf32>,
    %c1 = arith.constant 1 : index
    %c8 = arith.constant 8 : index
    %c0_14 = arith.constant 0 : index
    %19 = vector.load %arg12[%c1, %c8, %c0_14] : memref<18x32x32xf32, #tpu.memory_space<vmem>>, vector<16x16x32xf32>
    tpu.vector_store %arg12[%c1, %c8, %c0_14], %16 {strides = array<i32>} : memref<18x32x32xf32, #tpu.memory_space<vmem>>, vector<16x16x32xf32>,
    %c0_15 = arith.constant 0 : index
    %c0_16 = arith.constant 0 : index
    %c0_17 = arith.constant 0 : index
    %20 = vector.load %arg12[%c0_15, %c0_16, %c0_17] : memref<18x32x32xf32, #tpu.memory_space<vmem>>, vector<18x32x32xf32>
    %c0_18 = arith.constant 0 : index
    %c0_19 = arith.constant 0 : index
    %21 = vector.load %arg5[%c0_18, %c0_19] : memref<9x32xf32, #tpu.memory_space<vmem>>, vector<9x32xf32>
    %22 = vector.extract_strided_slice %20 {offsets = [0, 7, 0], sizes = [16, 16, 32], strides = [1, 1, 1]} : vector<18x32x32xf32> to vector<16x16x32xf32>
    %23 = vector.extract_strided_slice %21 {offsets = [0, 0], sizes = [1, 32], strides = [1, 1]} : vector<9x32xf32> to vector<1x32xf32>
    %24 = vector.shape_cast %23 : vector<1x32xf32> to vector<32xf32>
    %25 = vector.shape_cast %24 : vector<32xf32> to vector<1x1x32xf32>
    %26 = vector.broadcast %25 : vector<1x1x32xf32> to vector<16x16x32xf32>
    %27 = arith.mulf %22, %26 : vector<16x16x32xf32>
    %28 = vector.extract_strided_slice %20 {offsets = [0, 8, 0], sizes = [16, 16, 32], strides = [1, 1, 1]} : vector<18x32x32xf32> to vector<16x16x32xf32>
    %29 = vector.extract_strided_slice %21 {offsets = [1, 0], sizes = [1, 32], strides = [1, 1]} : vector<9x32xf32> to vector<1x32xf32>
    %30 = vector.shape_cast %29 : vector<1x32xf32> to vector<32xf32>
    %31 = vector.shape_cast %30 : vector<32xf32> to vector<1x1x32xf32>
    %32 = vector.broadcast %31 : vector<1x1x32xf32> to vector<16x16x32xf32>
    %33 = arith.mulf %28, %32 : vector<16x16x32xf32>
    %34 = arith.addf %27, %33 : vector<16x16x32xf32>
    %35 = vector.extract_strided_slice %20 {offsets = [0, 9, 0], sizes = [16, 16, 32], strides = [1, 1, 1]} : vector<18x32x32xf32> to vector<16x16x32xf32>
    %36 = vector.extract_strided_slice %21 {offsets = [2, 0], sizes = [1, 32], strides = [1, 1]} : vector<9x32xf32> to vector<1x32xf32>
    %37 = vector.shape_cast %36 : vector<1x32xf32> to vector<32xf32>
    %38 = vector.shape_cast %37 : vector<32xf32> to vector<1x1x32xf32>
    %39 = vector.broadcast %38 : vector<1x1x32xf32> to vector<16x16x32xf32>
    %40 = arith.mulf %35, %39 : vector<16x16x32xf32>
    %41 = arith.addf %34, %40 : vector<16x16x32xf32>
    %42 = vector.extract_strided_slice %20 {offsets = [1, 7, 0], sizes = [16, 16, 32], strides = [1, 1, 1]} : vector<18x32x32xf32> to vector<16x16x32xf32>
    %43 = vector.extract_strided_slice %21 {offsets = [3, 0], sizes = [1, 32], strides = [1, 1]} : vector<9x32xf32> to vector<1x32xf32>
    %44 = vector.shape_cast %43 : vector<1x32xf32> to vector<32xf32>
    %45 = vector.shape_cast %44 : vector<32xf32> to vector<1x1x32xf32>
    %46 = vector.broadcast %45 : vector<1x1x32xf32> to vector<16x16x32xf32>
    %47 = arith.mulf %42, %46 : vector<16x16x32xf32>
    %48 = arith.addf %41, %47 : vector<16x16x32xf32>
    %49 = vector.extract_strided_slice %20 {offsets = [1, 8, 0], sizes = [16, 16, 32], strides = [1, 1, 1]} : vector<18x32x32xf32> to vector<16x16x32xf32>
    %50 = vector.extract_strided_slice %21 {offsets = [4, 0], sizes = [1, 32], strides = [1, 1]} : vector<9x32xf32> to vector<1x32xf32>
    %51 = vector.shape_cast %50 : vector<1x32xf32> to vector<32xf32>
    %52 = vector.shape_cast %51 : vector<32xf32> to vector<1x1x32xf32>
    %53 = vector.broadcast %52 : vector<1x1x32xf32> to vector<16x16x32xf32>
    %54 = arith.mulf %49, %53 : vector<16x16x32xf32>
    %55 = arith.addf %48, %54 : vector<16x16x32xf32>
    %56 = vector.extract_strided_slice %20 {offsets = [1, 9, 0], sizes = [16, 16, 32], strides = [1, 1, 1]} : vector<18x32x32xf32> to vector<16x16x32xf32>
    %57 = vector.extract_strided_slice %21 {offsets = [5, 0], sizes = [1, 32], strides = [1, 1]} : vector<9x32xf32> to vector<1x32xf32>
    %58 = vector.shape_cast %57 : vector<1x32xf32> to vector<32xf32>
    %59 = vector.shape_cast %58 : vector<32xf32> to vector<1x1x32xf32>
    %60 = vector.broadcast %59 : vector<1x1x32xf32> to vector<16x16x32xf32>
    %61 = arith.mulf %56, %60 : vector<16x16x32xf32>
    %62 = arith.addf %55, %61 : vector<16x16x32xf32>
    %63 = vector.extract_strided_slice %20 {offsets = [2, 7, 0], sizes = [16, 16, 32], strides = [1, 1, 1]} : vector<18x32x32xf32> to vector<16x16x32xf32>
    %64 = vector.extract_strided_slice %21 {offsets = [6, 0], sizes = [1, 32], strides = [1, 1]} : vector<9x32xf32> to vector<1x32xf32>
    %65 = vector.shape_cast %64 : vector<1x32xf32> to vector<32xf32>
    %66 = vector.shape_cast %65 : vector<32xf32> to vector<1x1x32xf32>
    %67 = vector.broadcast %66 : vector<1x1x32xf32> to vector<16x16x32xf32>
    %68 = arith.mulf %63, %67 : vector<16x16x32xf32>
    %69 = arith.addf %62, %68 : vector<16x16x32xf32>
    %70 = vector.extract_strided_slice %20 {offsets = [2, 8, 0], sizes = [16, 16, 32], strides = [1, 1, 1]} : vector<18x32x32xf32> to vector<16x16x32xf32>
    %71 = vector.extract_strided_slice %21 {offsets = [7, 0], sizes = [1, 32], strides = [1, 1]} : vector<9x32xf32> to vector<1x32xf32>
    %72 = vector.shape_cast %71 : vector<1x32xf32> to vector<32xf32>
    %73 = vector.shape_cast %72 : vector<32xf32> to vector<1x1x32xf32>
    %74 = vector.broadcast %73 : vector<1x1x32xf32> to vector<16x16x32xf32>
    %75 = arith.mulf %70, %74 : vector<16x16x32xf32>
    %76 = arith.addf %69, %75 : vector<16x16x32xf32>
    %77 = vector.extract_strided_slice %20 {offsets = [2, 9, 0], sizes = [16, 16, 32], strides = [1, 1, 1]} : vector<18x32x32xf32> to vector<16x16x32xf32>
    %78 = vector.extract_strided_slice %21 {offsets = [8, 0], sizes = [1, 32], strides = [1, 1]} : vector<9x32xf32> to vector<1x32xf32>
    %79 = vector.shape_cast %78 : vector<1x32xf32> to vector<32xf32>
    %80 = vector.shape_cast %79 : vector<32xf32> to vector<1x1x32xf32>
    %81 = vector.broadcast %80 : vector<1x1x32xf32> to vector<16x16x32xf32>
    %82 = arith.mulf %77, %81 : vector<16x16x32xf32>
    %83 = arith.addf %76, %82 : vector<16x16x32xf32>
    %84 = vector.shape_cast %83 : vector<16x16x32xf32> to vector<256x32xf32>
    %c0_20 = arith.constant 0 : index
    %c0_21 = arith.constant 0 : index
    %85 = vector.load %arg6[%c0_20, %c0_21] : memref<1x32xf32, #tpu.memory_space<vmem>>, vector<1x32xf32>
    %86 = vector.broadcast %85 : vector<1x32xf32> to vector<256x32xf32>
    %87 = arith.mulf %84, %86 : vector<256x32xf32>
    %c0_22 = arith.constant 0 : index
    %c0_23 = arith.constant 0 : index
    %88 = vector.load %arg7[%c0_22, %c0_23] : memref<1x32xf32, #tpu.memory_space<vmem>>, vector<1x32xf32>
    %89 = vector.broadcast %88 : vector<1x32xf32> to vector<256x32xf32>
    %90 = arith.addf %87, %89 : vector<256x32xf32>
    %cst_24 = arith.constant 0.000000e+00 : f32
    %91 = vector.broadcast %cst_24 : f32 to vector<256x32xf32>
    %92 = arith.cmpf oge, %90, %91 : vector<256x32xf32>
    %cst_25 = arith.constant 1.000000e-01 : f32
    %93 = vector.broadcast %cst_25 : f32 to vector<256x32xf32>
    %94 = arith.mulf %93, %90 : vector<256x32xf32>
    %95 = arith.select %92, %90, %94 : vector<256x32xi1>, vector<256x32xf32>
    %c0_26 = arith.constant 0 : index
    %c0_27 = arith.constant 0 : index
    %96 = vector.load %arg8[%c0_26, %c0_27] : memref<16x32xf32, #tpu.memory_space<vmem>>, vector<16x32xf32>
    %cst_28 = arith.constant dense<0.000000e+00> : vector<16x256xf32>
    %97 = tpu.matmul %96, %95, %cst_28 {dimension_numbers = #tpu.dot_dimension_numbers<[1], [1], [0], [0], [0, 0, 1, 0], [], []>} : vector<16x32xf32>, vector<256x32xf32>, vector<16x256xf32> -> vector<16x256xf32>
    %c0_29 = arith.constant 0 : index
    %c0_30 = arith.constant 0 : index
    %98 = vector.load %arg9[%c0_29, %c0_30] : memref<16x1xf32, #tpu.memory_space<vmem>>, vector<16x1xf32>
    %99 = vector.broadcast %98 : vector<16x1xf32> to vector<16x256xf32>
    %100 = arith.mulf %97, %99 : vector<16x256xf32>
    %c0_31 = arith.constant 0 : index
    %c0_32 = arith.constant 0 : index
    %101 = vector.load %arg10[%c0_31, %c0_32] : memref<16x1xf32, #tpu.memory_space<vmem>>, vector<16x1xf32>
    %102 = vector.broadcast %101 : vector<16x1xf32> to vector<16x256xf32>
    %103 = arith.addf %100, %102 : vector<16x256xf32>
    %104 = arith.addf %103, %1 : vector<16x256xf32>
    %c0_33 = arith.constant 0 : index
    %c0_34 = arith.constant 0 : index
    %c0_35 = arith.constant 0 : index
    %105 = vector.load %arg11[%c0_33, %c0_34, %c0_35] : memref<1x16x256xf32, #tpu.memory_space<vmem>>, vector<1x16x256xf32>
    %106 = vector.shape_cast %105 : vector<1x16x256xf32> to vector<16x256xf32>
    %107 = vector.shape_cast %104 : vector<16x256xf32> to vector<1x16x256xf32>
    tpu.vector_store %arg11[%c0_33, %c0_34, %c0_35], %107 {strides = array<i32>} : memref<1x16x256xf32, #tpu.memory_space<vmem>>, vector<1x16x256xf32>,
    return
  }
  func.func @transform_0(%arg0: i32) -> (i32, i32, i32) {
    %c0_i32 = arith.constant 0 : i32
    %c0_i32_0 = arith.constant 0 : i32
    %c0_i32_1 = arith.constant 0 : i32
    return %arg0, %c0_i32, %c0_i32_0 : i32, i32, i32
  }
  func.func @transform_1(%arg0: i32) -> (i32, i32) {
    %c0_i32 = arith.constant 0 : i32
    %c0_i32_0 = arith.constant 0 : i32
    %c0_i32_1 = arith.constant 0 : i32
    return %c0_i32, %c0_i32_0 : i32, i32
  }
  func.func @transform_2(%arg0: i32) -> (i32, i32) {
    %c0_i32 = arith.constant 0 : i32
    %c0_i32_0 = arith.constant 0 : i32
    %c0_i32_1 = arith.constant 0 : i32
    return %c0_i32, %c0_i32_0 : i32, i32
  }
  func.func @transform_3(%arg0: i32) -> (i32, i32) {
    %c0_i32 = arith.constant 0 : i32
    %c0_i32_0 = arith.constant 0 : i32
    %c0_i32_1 = arith.constant 0 : i32
    return %c0_i32, %c0_i32_0 : i32, i32
  }
  func.func @transform_4(%arg0: i32) -> (i32, i32) {
    %c0_i32 = arith.constant 0 : i32
    %c0_i32_0 = arith.constant 0 : i32
    %c0_i32_1 = arith.constant 0 : i32
    return %c0_i32, %c0_i32_0 : i32, i32
  }
  func.func @transform_5(%arg0: i32) -> (i32, i32) {
    %c0_i32 = arith.constant 0 : i32
    %c0_i32_0 = arith.constant 0 : i32
    %c0_i32_1 = arith.constant 0 : i32
    return %c0_i32, %c0_i32_0 : i32, i32
  }
  func.func @transform_6(%arg0: i32) -> (i32, i32) {
    %c0_i32 = arith.constant 0 : i32
    %c0_i32_0 = arith.constant 0 : i32
    %c0_i32_1 = arith.constant 0 : i32
    return %c0_i32, %c0_i32_0 : i32, i32
  }
  func.func @transform_7(%arg0: i32) -> (i32, i32) {
    %c0_i32 = arith.constant 0 : i32
    %c0_i32_0 = arith.constant 0 : i32
    %c0_i32_1 = arith.constant 0 : i32
    return %c0_i32, %c0_i32_0 : i32, i32
  }
  func.func @transform_8(%arg0: i32) -> (i32, i32) {
    %c0_i32 = arith.constant 0 : i32
    %c0_i32_0 = arith.constant 0 : i32
    %c0_i32_1 = arith.constant 0 : i32
    return %c0_i32, %c0_i32_0 : i32, i32
  }
  func.func @transform_9(%arg0: i32) -> (i32, i32) {
    %c0_i32 = arith.constant 0 : i32
    %c0_i32_0 = arith.constant 0 : i32
    %c0_i32_1 = arith.constant 0 : i32
    return %c0_i32, %c0_i32_0 : i32, i32
  }
  func.func @transform_10(%arg0: i32) -> (i32, i32, i32) {
    %c0_i32 = arith.constant 0 : i32
    %c0_i32_0 = arith.constant 0 : i32
    %c0_i32_1 = arith.constant 0 : i32
    return %arg0, %c0_i32, %c0_i32_0 : i32, i32, i32
  }
}

</mosaic_0001>

<llo_original>
// kernel: tpu_custom_call.1
$region0: #{tpu_custom_call.1}
  #allocation0 [shape = 'u32[]', space=smem, size = 0x4, offset = 0x4, fixed_abs, tag = 'smem constant byte address 0x4 - core index']
  #allocation1 [shape = 'u32[144,128]{1,0:T(1,128)}', space=vmem, size = 0x12000, scoped, tag = 'internal scratch']
  #allocation2 [shape = 'f32[18,32,32]{2,1,0:T(8,128)}', space=vmem, size = 0x48000, scoped, tag = 'scratch operand']
  %s0 = inlined_call_operand.vmem [shape: f32[2,16,256], index: 0, kind: input, shape index: {}]
  %s1 = inlined_call_operand.vmem [shape: f32[32,16], index: 1, kind: input, shape index: {}]
  %s2 = inlined_call_operand.vmem [shape: f32[32,1], index: 2, kind: input, shape index: {}]
  %s3 = inlined_call_operand.vmem [shape: f32[32,1], index: 3, kind: input, shape index: {}]
  %s4 = inlined_call_operand.vmem [shape: f32[9,32], index: 4, kind: input, shape index: {}]
  %s5 = inlined_call_operand.vmem [shape: f32[1,32], index: 5, kind: input, shape index: {}]
  %s6 = inlined_call_operand.vmem [shape: f32[1,32], index: 6, kind: input, shape index: {}]
  %s7 = inlined_call_operand.vmem [shape: f32[16,32], index: 7, kind: input, shape index: {}]
  %s8 = inlined_call_operand.vmem [shape: f32[16,1], index: 8, kind: input, shape index: {}]
  %s9 = inlined_call_operand.vmem [shape: f32[16,1], index: 9, kind: input, shape index: {}]
  %s10 = inlined_call_operand.hbm [shape: f32[2,16,256], index: 10, kind: output, shape index: {}]
  %s11 = sld [smem:[#allocation0]]
  $region73: #{tpu_custom_call.1} parent=0
    _
  %s13 = ssub.s32 1, %s11
  %s14 = scalar_select 0, %s13, %s11
  $region1: #{tpu_custom_call.1} parent=0
    #allocation3 [shape = 'u8[32768]{0}', space=vmem, size = 0x8000, scoped, tag = 'output window, operand 0']
    #allocation4 [shape = 's32[2]{0}', space=sflag, size = 0x8, scoped, tag = 'scoped memory for tpu_custom_call.1']
    %15 = vsyncpa [#allocation4], 0
    %s16 = scalar_lea.sflag [#allocation4], 1
    %17 = vsyncpa %s16, 0
    loop: start=0, step=1, limit=4
    $region2: #{tpu_custom_call.1} parent=1 // loop_pre_header
      _
    $region3: #{tpu_custom_call.1} parent=1 // loop_header
      %s19 = sphi 0, %s23
      %p20 = scmp.ge.s32.totalorder %s19, 4
      %s29 = sphi 0, %s31
      %s32 = sphi 0, %s29
      %s33 = sphi 0, %s32
      %s49 = sphi 0, %s33
      %s53 = sphi 0, %s53
      %s55 = sphi 0, %s53
      %s56 = sphi 0, %s55
      %s70 = sphi 0, %s56
      %s74 = sphi 0, %s74
      %s76 = sphi 0, %s74
      %s77 = sphi 0, %s76
      %s91 = sphi 0, %s77
      %s95 = sphi 0, %s95
      %s97 = sphi 0, %s95
      %s98 = sphi 0, %s97
      %s112 = sphi 0, %s98
      %s116 = sphi 0, %s116
      %s118 = sphi 0, %s116
      %s119 = sphi 0, %s118
      %s133 = sphi 0, %s119
      %s137 = sphi 0, %s137
      %s139 = sphi 0, %s137
      %s140 = sphi 0, %s139
      %s154 = sphi 0, %s140
      %s158 = sphi 0, %s158
      %s160 = sphi 0, %s158
      %s161 = sphi 0, %s160
      %s175 = sphi 0, %s161
      %s179 = sphi 0, %s179
      %s181 = sphi 0, %s179
      %s182 = sphi 0, %s181
      %s196 = sphi 0, %s182
      %s200 = sphi 0, %s200
      %s202 = sphi 0, %s200
      %s203 = sphi 0, %s202
      %s217 = sphi 0, %s203
      %s221 = sphi 0, %s221
      %s223 = sphi 0, %s221
      %s224 = sphi 0, %s223
      %s238 = sphi 0, %s224
      %s244 = sphi 0, %s246
      %s247 = sphi 0, %s244
      %s248 = sphi 0, %s247
      %s264 = sphi 0, %s248
    $region4: #{tpu_custom_call.1} parent=1 // loop_header_branch
      %22 = sbr.rel (%p20) target = $region8
    $region5: #{tpu_custom_call.1} parent=1 // loop_body
      %s24 = ssub.s32 %s19, 1
      %s25 = ssub.s32 %s19, 2
      %s26 = sadd.s32 %s19, 1
      %s27 = ssub.s32 %s19, %s26
      %p28 = scmp.eq.s32.totalorder %s27, 0
      %s30 = sadd.s32 %s29, 1
      %s31 = scalar_select %p28, %s29, %s30
      %p34 = pneg %p28
      %p35 = scmp.eq.s32.totalorder %s19, 1
      %p36 = por %p34, %p35
      %p37 = scmp.ne.s32.totalorder %s29, %s32
      %p38 = scmp.eq.s32.totalorder %s19, 0
      %p39 = por %p37, %p38
      %p40 = scmp.ne.s32.totalorder %s29, %s32
      %p41 = scmp.eq.s32.totalorder %s24, 1
      %p42 = por %p40, %p41
      %p43 = scmp.ne.s32.totalorder %s32, %s33
      %p44 = scmp.eq.s32.totalorder %s24, 0
      %p45 = por %p43, %p44
      %p46 = scmp.ne.s32.totalorder %s32, %s33
      %p47 = scmp.eq.s32.totalorder %s25, 1
      %p48 = por %p46, %p47
      %p50 = scmp.ne.s32.totalorder %s33, %s49
      %p51 = scmp.eq.s32.totalorder %s25, 0
      %p52 = por %p50, %p51
      %s54 = sadd.s32 %s53, 1
      %p57 = scmp.eq.s32.totalorder %s19, 1
      %p58 = scmp.ne.s32.totalorder %s53, %s55
      %p59 = scmp.eq.s32.totalorder %s19, 0
      %p60 = por %p58, %p59
      %p61 = scmp.ne.s32.totalorder %s53, %s55
      %p62 = scmp.eq.s32.totalorder %s24, 1
      %p63 = por %p61, %p62
      %p64 = scmp.ne.s32.totalorder %s55, %s56
      %p65 = scmp.eq.s32.totalorder %s24, 0
      %p66 = por %p64, %p65
      %p67 = scmp.ne.s32.totalorder %s55, %s56
      %p68 = scmp.eq.s32.totalorder %s25, 1
      %p69 = por %p67, %p68
      %p71 = scmp.ne.s32.totalorder %s56, %s70
      %p72 = scmp.eq.s32.totalorder %s25, 0
      %p73 = por %p71, %p72
      %s75 = sadd.s32 %s74, 1
      %p78 = scmp.eq.s32.totalorder %s19, 1
      %p79 = scmp.ne.s32.totalorder %s74, %s76
      %p80 = scmp.eq.s32.totalorder %s19, 0
      %p81 = por %p79, %p80
      %p82 = scmp.ne.s32.totalorder %s74, %s76
      %p83 = scmp.eq.s32.totalorder %s24, 1
      %p84 = por %p82, %p83
      %p85 = scmp.ne.s32.totalorder %s76, %s77
      %p86 = scmp.eq.s32.totalorder %s24, 0
      %p87 = por %p85, %p86
      %p88 = scmp.ne.s32.totalorder %s76, %s77
      %p89 = scmp.eq.s32.totalorder %s25, 1
      %p90 = por %p88, %p89
      %p92 = scmp.ne.s32.totalorder %s77, %s91
      %p93 = scmp.eq.s32.totalorder %s25, 0
      %p94 = por %p92, %p93
      %s96 = sadd.s32 %s95, 1
      %p99 = scmp.eq.s32.totalorder %s19, 1
      %p100 = scmp.ne.s32.totalorder %s95, %s97
      %p101 = scmp.eq.s32.totalorder %s19, 0
      %p102 = por %p100, %p101
      %p103 = scmp.ne.s32.totalorder %s95, %s97
      %p104 = scmp.eq.s32.totalorder %s24, 1
      %p105 = por %p103, %p104
      %p106 = scmp.ne.s32.totalorder %s97, %s98
      %p107 = scmp.eq.s32.totalorder %s24, 0
      %p108 = por %p106, %p107
      %p109 = scmp.ne.s32.totalorder %s97, %s98
      %p110 = scmp.eq.s32.totalorder %s25, 1
      %p111 = por %p109, %p110
      %p113 = scmp.ne.s32.totalorder %s98, %s112
      %p114 = scmp.eq.s32.totalorder %s25, 0
      %p115 = por %p113, %p114
      %s117 = sadd.s32 %s116, 1
      %p120 = scmp.eq.s32.totalorder %s19, 1
      %p121 = scmp.ne.s32.totalorder %s116, %s118
      %p122 = scmp.eq.s32.totalorder %s19, 0
      %p123 = por %p121, %p122
      %p124 = scmp.ne.s32.totalorder %s116, %s118
      %p125 = scmp.eq.s32.totalorder %s24, 1
      %p126 = por %p124, %p125
      %p127 = scmp.ne.s32.totalorder %s118, %s119
      %p128 = scmp.eq.s32.totalorder %s24, 0
      %p129 = por %p127, %p128
      %p130 = scmp.ne.s32.totalorder %s118, %s119
      %p131 = scmp.eq.s32.totalorder %s25, 1
      %p132 = por %p130, %p131
      %p134 = scmp.ne.s32.totalorder %s119, %s133
      %p135 = scmp.eq.s32.totalorder %s25, 0
      %p136 = por %p134, %p135
      %s138 = sadd.s32 %s137, 1
      %p141 = scmp.eq.s32.totalorder %s19, 1
      %p142 = scmp.ne.s32.totalorder %s137, %s139
      %p143 = scmp.eq.s32.totalorder %s19, 0
      %p144 = por %p142, %p143
      %p145 = scmp.ne.s32.totalorder %s137, %s139
      %p146 = scmp.eq.s32.totalorder %s24, 1
      %p147 = por %p145, %p146
      %p148 = scmp.ne.s32.totalorder %s139, %s140
      %p149 = scmp.eq.s32.totalorder %s24, 0
      %p150 = por %p148, %p149
      %p151 = scmp.ne.s32.totalorder %s139, %s140
      %p152 = scmp.eq.s32.totalorder %s25, 1
      %p153 = por %p151, %p152
      %p155 = scmp.ne.s32.totalorder %s140, %s154
      %p156 = scmp.eq.s32.totalorder %s25, 0
      %p157 = por %p155, %p156
      %s159 = sadd.s32 %s158, 1
      %p162 = scmp.eq.s32.totalorder %s19, 1
      %p163 = scmp.ne.s32.totalorder %s158, %s160
      %p164 = scmp.eq.s32.totalorder %s19, 0
      %p165 = por %p163, %p164
      %p166 = scmp.ne.s32.totalorder %s158, %s160
      %p167 = scmp.eq.s32.totalorder %s24, 1
      %p168 = por %p166, %p167
      %p169 = scmp.ne.s32.totalorder %s160, %s161
      %p170 = scmp.eq.s32.totalorder %s24, 0
      %p171 = por %p169, %p170
      %p172 = scmp.ne.s32.totalorder %s160, %s161
      %p173 = scmp.eq.s32.totalorder %s25, 1
      %p174 = por %p172, %p173
      %p176 = scmp.ne.s32.totalorder %s161, %s175
      %p177 = scmp.eq.s32.totalorder %s25, 0
      %p178 = por %p176, %p177
      %s180 = sadd.s32 %s179, 1
      %p183 = scmp.eq.s32.totalorder %s19, 1
      %p184 = scmp.ne.s32.totalorder %s179, %s181
      %p185 = scmp.eq.s32.totalorder %s19, 0
      %p186 = por %p184, %p185
      %p187 = scmp.ne.s32.totalorder %s179, %s181
      %p188 = scmp.eq.s32.totalorder %s24, 1
      %p189 = por %p187, %p188
      %p190 = scmp.ne.s32.totalorder %s181, %s182
      %p191 = scmp.eq.s32.totalorder %s24, 0
      %p192 = por %p190, %p191
      %p193 = scmp.ne.s32.totalorder %s181, %s182
      %p194 = scmp.eq.s32.totalorder %s25, 1
      %p195 = por %p193, %p194
      %p197 = scmp.ne.s32.totalorder %s182, %s196
      %p198 = scmp.eq.s32.totalorder %s25, 0
      %p199 = por %p197, %p198
      %s201 = sadd.s32 %s200, 1
      %p204 = scmp.eq.s32.totalorder %s19, 1
      %p205 = scmp.ne.s32.totalorder %s200, %s202
      %p206 = scmp.eq.s32.totalorder %s19, 0
      %p207 = por %p205, %p206
      %p208 = scmp.ne.s32.totalorder %s200, %s202
      %p209 = scmp.eq.s32.totalorder %s24, 1
      %p210 = por %p208, %p209
      %p211 = scmp.ne.s32.totalorder %s202, %s203
      %p212 = scmp.eq.s32.totalorder %s24, 0
      %p213 = por %p211, %p212
      %p214 = scmp.ne.s32.totalorder %s202, %s203
      %p215 = scmp.eq.s32.totalorder %s25, 1
      %p216 = por %p214, %p215
      %p218 = scmp.ne.s32.totalorder %s203, %s217
      %p219 = scmp.eq.s32.totalorder %s25, 0
      %p220 = por %p218, %p219
      %s222 = sadd.s32 %s221, 1
      %p225 = scmp.eq.s32.totalorder %s19, 1
      %p226 = scmp.ne.s32.totalorder %s221, %s223
      %p227 = scmp.eq.s32.totalorder %s19, 0
      %p228 = por %p226, %p227
      %p229 = scmp.ne.s32.totalorder %s221, %s223
      %p230 = scmp.eq.s32.totalorder %s24, 1
      %p231 = por %p229, %p230
      %p232 = scmp.ne.s32.totalorder %s223, %s224
      %p233 = scmp.eq.s32.totalorder %s24, 0
      %p234 = por %p232, %p233
      %p235 = scmp.ne.s32.totalorder %s223, %s224
      %p236 = scmp.eq.s32.totalorder %s25, 1
      %p237 = por %p235, %p236
      %p239 = scmp.ne.s32.totalorder %s224, %s238
      %p240 = scmp.eq.s32.totalorder %s25, 0
      %p241 = por %p239, %p240
      %s242 = ssub.s32 %s19, %s26
      %p243 = scmp.eq.s32.totalorder %s242, 0
      %s245 = sadd.s32 %s244, 1
      %s246 = scalar_select %p243, %s244, %s245
      %p249 = pneg %p243
      %p250 = scmp.eq.s32.totalorder %s19, 1
      %p251 = por %p249, %p250
      %p252 = scmp.ne.s32.totalorder %s244, %s247
      %p253 = scmp.eq.s32.totalorder %s19, 0
      %p254 = por %p252, %p253
      %p255 = scmp.ne.s32.totalorder %s244, %s247
      %p256 = scmp.eq.s32.totalorder %s24, 1
      %p257 = por %p255, %p256
      %p258 = scmp.ne.s32.totalorder %s247, %s248
      %p259 = scmp.eq.s32.totalorder %s24, 0
      %p260 = por %p258, %p259
      %p261 = scmp.ne.s32.totalorder %s247, %s248
      %p262 = scmp.eq.s32.totalorder %s25, 1
      %p263 = por %p261, %p262
      %p265 = scmp.ne.s32.totalorder %s248, %s264
      %p266 = scmp.eq.s32.totalorder %s25, 0
      %p267 = por %p265, %p266
      %p268 = scmp.le.s32.totalorder 1, %s19
      %p269 = scmp.lt.s32.totalorder %s19, 3
      %p270 = pnand %p268, %p269
      %p271 = pneg %p270
      // Predicated region
      $region9: #{tpu_custom_call.1} parent=5 // pred_check
        _
      $region10: #{tpu_custom_call.1} parent=5 // pred_check_branch
        %273 = sbr.rel (%p270) target = $region12
      $region11: #{tpu_custom_call.1} parent=5 // pred_region
        %s274 = ssub.s32 %s19, 1
        // Predicated region
        $region13: #{tpu_custom_call.1} parent=11 // pred_check
          %p275 = pneg %p66
        $region14: #{tpu_custom_call.1} parent=11 // pred_check_branch
          %277 = sbr.rel (%p275) target = $region16
        $region15: #{tpu_custom_call.1} parent=11 // pred_region
          _
        $region16: #{tpu_custom_call.1} parent=11 // pred_fallthru
          _
        // Predicated region
        $region17: #{tpu_custom_call.1} parent=11 // pred_check
          %p278 = pneg %p87
        $region18: #{tpu_custom_call.1} parent=11 // pred_check_branch
          %280 = sbr.rel (%p278) target = $region20
        $region19: #{tpu_custom_call.1} parent=11 // pred_region
          _
        $region20: #{tpu_custom_call.1} parent=11 // pred_fallthru
          _
        // Predicated region
        $region21: #{tpu_custom_call.1} parent=11 // pred_check
          %p281 = pneg %p108
        $region22: #{tpu_custom_call.1} parent=11 // pred_check_branch
          %283 = sbr.rel (%p281) target = $region24
        $region23: #{tpu_custom_call.1} parent=11 // pred_region
          _
        $region24: #{tpu_custom_call.1} parent=11 // pred_fallthru
          _
        // Predicated region
        $region25: #{tpu_custom_call.1} parent=11 // pred_check
          %p284 = pneg %p129
        $region26: #{tpu_custom_call.1} parent=11 // pred_check_branch
          %286 = sbr.rel (%p284) target = $region28
        $region27: #{tpu_custom_call.1} parent=11 // pred_region
          _
        $region28: #{tpu_custom_call.1} parent=11 // pred_fallthru
          _
        // Predicated region
        $region29: #{tpu_custom_call.1} parent=11 // pred_check
          %p287 = pneg %p150
        $region30: #{tpu_custom_call.1} parent=11 // pred_check_branch
          %289 = sbr.rel (%p287) target = $region32
        $region31: #{tpu_custom_call.1} parent=11 // pred_region
          _
        $region32: #{tpu_custom_call.1} parent=11 // pred_fallthru
          _
        // Predicated region
        $region33: #{tpu_custom_call.1} parent=11 // pred_check
          %p290 = pneg %p171
        $region34: #{tpu_custom_call.1} parent=11 // pred_check_branch
          %292 = sbr.rel (%p290) target = $region36
        $region35: #{tpu_custom_call.1} parent=11 // pred_region
          _
        $region36: #{tpu_custom_call.1} parent=11 // pred_fallthru
          _
        // Predicated region
        $region37: #{tpu_custom_call.1} parent=11 // pred_check
          %p293 = pneg %p192
        $region38: #{tpu_custom_call.1} parent=11 // pred_check_branch
          %295 = sbr.rel (%p293) target = $region40
        $region39: #{tpu_custom_call.1} parent=11 // pred_region
          _
        $region40: #{tpu_custom_call.1} parent=11 // pred_fallthru
          _
        // Predicated region
        $region41: #{tpu_custom_call.1} parent=11 // pred_check
          %p296 = pneg %p213
        $region42: #{tpu_custom_call.1} parent=11 // pred_check_branch
          %298 = sbr.rel (%p296) target = $region44
        $region43: #{tpu_custom_call.1} parent=11 // pred_region
          _
        $region44: #{tpu_custom_call.1} parent=11 // pred_fallthru
          _
        // Predicated region
        $region45: #{tpu_custom_call.1} parent=11 // pred_check
          %p299 = pneg %p234
        $region46: #{tpu_custom_call.1} parent=11 // pred_check_branch
          %301 = sbr.rel (%p299) target = $region48
        $region47: #{tpu_custom_call.1} parent=11 // pred_region
          _
        $region48: #{tpu_custom_call.1} parent=11 // pred_fallthru
          _
      $region12: #{tpu_custom_call.1} parent=5 // pred_fallthru
        _
      %p302 = scmp.lt.s32.totalorder %s19, 2
      // Predicated region
      $region49: #{tpu_custom_call.1} parent=5 // pred_check
        %p303 = pneg %p302
      $region50: #{tpu_custom_call.1} parent=5 // pred_check_branch
        %305 = sbr.rel (%p303) target = $region52
      $region51: #{tpu_custom_call.1} parent=5 // pred_region
        // Predicated region
        $region53: #{tpu_custom_call.1} parent=51 // pred_check
          %p306 = pneg %p39
        $region54: #{tpu_custom_call.1} parent=51 // pred_check_branch
          %308 = sbr.rel (%p306) target = $region56
        $region55: #{tpu_custom_call.1} parent=51 // pred_region
          %p309 = scmp.lt.s32.totalorder %s19, 1
          %s310 = scalar_select %p309, %s19, 1
          %s311 = smul.addr %s310, 4
          %s312 = smul.addr %s311, 8
          %s313 = scalar_lea.vmem %s0, %s312
        $region56: #{tpu_custom_call.1} parent=51 // pred_fallthru
          _
      $region52: #{tpu_custom_call.1} parent=5 // pred_fallthru
        _
      %p314 = scmp.le.s32.totalorder 1, %s19
      %p315 = scmp.lt.s32.totalorder %s19, 3
      %p316 = pnand %p314, %p315
      %p317 = pneg %p316
      // Predicated region
      $region57: #{tpu_custom_call.1} parent=5 // pred_check
        _
      $region58: #{tpu_custom_call.1} parent=5 // pred_check_branch
        %319 = sbr.rel (%p316) target = $region60
      $region59: #{tpu_custom_call.1} parent=5 // pred_region
        %s320 = ssub.s32 %s19, 1
        %p321 = scmp.lt.s32.totalorder %s24, 1
        %s322 = scalar_select %p321, %s24, 1
        %s323 = smul.addr %s322, 4
        %s324 = smul.addr %s323, 8
        %s325 = scalar_lea.vmem %s0, %s324
        %p326 = pneg %p45
        %p327 = pneg %p42
        %p328 = pneg %p66
        %p329 = pneg %p63
        %p330 = pneg %p87
        %p331 = pneg %p84
        %p332 = pneg %p108
        %p333 = pneg %p105
        %p334 = pneg %p129
        %p335 = pneg %p126
        %p336 = pneg %p150
        %p337 = pneg %p147
        %p338 = pneg %p171
        %p339 = pneg %p168
        %p340 = pneg %p192
        %p341 = pneg %p189
        %p342 = pneg %p213
        %p343 = pneg %p210
        %p344 = pneg %p234
        %p345 = pneg %p231
        %p346 = pneg %p260
        %p347 = pneg %p257
        %s348 = sand.u32 %s247, 1
        %s349 = scalar_lea.sflag [#allocation4], %s348
        %s350 = sand.u32 %s247, 1
        %s351 = smul.addr %s350, 32
        %s352 = scalar_lea.vmem [#allocation3], %s351
        %p353 = scmp.lt.s32.totalorder %s24, 1
        %s354 = scalar_select %p353, %s24, 1
        %s355 = smul.addr %s354, 4
        %s356 = smul.addr %s355, 8
        %s357 = scalar_lea.vmem %s0, %s356
        %v358 = vld [vmem:[%s357] sm:$0xff]
        %v359 = vld [vmem:[%s357 + $0x8] sm:$0xff]
        %v360 = vld [vmem:[%s357 + $0x10] sm:$0xff]
        %v361 = vld [vmem:[%s357 + $0x18] sm:$0xff]
        %v362 = vld [vmem:[%s1] sm:$0xff]
        %v363 = vld [vmem:[%s1 + $0x8] sm:$0xff]
        %v364 = vld [vmem:[%s1 + $0x10] sm:$0xff]
        %v365 = vld [vmem:[%s1 + $0x18] sm:$0xff]
        %vm366 = vcmask 130048
        %v368 = vsel %vm366, %v362, 0
        %v371 = vsel %vm366, %v363, 0
        %v374 = vsel %vm366, %v364, 0
        %v377 = vsel %vm366, %v365, 0
        %379 = vmatprep.subr.mxu0 %v359
        %380 = vmatpush1.msra.mxu0 %v358
        %381 = vmatprep.subr.mxu0 %v361
        %382 = vmatpush1.msra.mxu0 %v360
        %383 = vmatprep.subr.mxu0 0.0
        %384 = vmatpush1.msra.mxu0 0.0
        %385 = vmatprep.subr.mxu0 0.0
        %386 = vmatpush1.msra.mxu0 0.0
        %387 = vmatprep.subr.mxu0 0.0
        %388 = vmatpush1.msra.mxu0 0.0
        %389 = vmatprep.subr.mxu0 0.0
        %390 = vmatpush1.msra.mxu0 0.0
        %391 = vmatprep.subr.mxu0 0.0
        %392 = vmatpush1.msra.mxu0 0.0
        %393 = vmatprep.subr.mxu0 0.0
        %394 = vmatpush1.msra.mxu0 0.0
        %395 = vmatprep.subr.mxu0 0.0
        %396 = vmatpush1.msra.mxu0 0.0
        %397 = vmatprep.subr.mxu0 0.0
        %398 = vmatpush1.msra.mxu0 0.0
        %399 = vmatprep.subr.mxu0 0.0
        %400 = vmatpush1.msra.mxu0 0.0
        %401 = vmatprep.subr.mxu0 0.0
        %402 = vmatpush1.msra.mxu0 0.0
        %403 = vmatprep.subr.mxu0 0.0
        %404 = vmatpush1.msra.mxu0 0.0
        %405 = vmatprep.subr.mxu0 0.0
        %406 = vmatpush1.msra.mxu0 0.0
        %407 = vmatprep.subr.mxu0 0.0
        %408 = vmatpush1.msra.mxu0 0.0
        %409 = vmatprep.subr.mxu0 0.0
        %410 = vmatpush1.msra.mxu0 0.0
        %411 = vmatprep.subr.mxu0 0.0
        %412 = vmatpush1.msra.mxu0 0.0
        %413 = vmatprep.subr.mxu0 0.0
        %414 = vmatpush1.msra.mxu0 0.0
        %415 = vmatprep.subr.mxu0 0.0
        %416 = vmatpush1.msra.mxu0 0.0
        %417 = vmatprep.subr.mxu0 0.0
        %418 = vmatpush1.msra.mxu0 0.0
        %419 = vmatprep.subr.mxu0 0.0
        %420 = vmatpush1.msra.mxu0 0.0
        %421 = vmatprep.subr.mxu0 0.0
        %422 = vmatpush1.msra.mxu0 0.0
        %423 = vmatprep.subr.mxu0 0.0
        %424 = vmatpush1.msra.mxu0 0.0
        %425 = vmatprep.subr.mxu0 0.0
        %426 = vmatpush1.msra.mxu0 0.0
        %427 = vmatprep.subr.mxu0 0.0
        %428 = vmatpush1.msra.mxu0 0.0
        %429 = vmatprep.subr.mxu0 0.0
        %430 = vmatpush1.msra.mxu0 0.0
        %431 = vmatprep.subr.mxu0 0.0
        %432 = vmatpush1.msra.mxu0 0.0
        %433 = vmatprep.subr.mxu0 0.0
        %434 = vmatpush1.msra.mxu0 0.0
        %435 = vmatprep.subr.mxu0 0.0
        %436 = vmatpush1.msra.mxu0 0.0
        %437 = vmatprep.subr.mxu0 0.0
        %438 = vmatpush1.msra.mxu0 0.0
        %439 = vmatprep.subr.mxu0 0.0
        %440 = vmatpush1.msra.mxu0 0.0
        %441 = vmatprep.subr.mxu0 0.0
        %442 = vmatpush1.msra.mxu0 0.0
        %443 = vmatprep.mubr.f32.mxu0 0.0
        %444 = vmatmul.mubr.f32.gmra.mrb[0].mxu0 %v368
        %v445 = vpop.f32.mrb[0].mxu0
        %v446 = vadd.f32 0.0, %v445
        %v447 = vpop.f32.mrb[0].mxu0
        %v448 = vadd.f32 0.0, %v447
        %449 = vmatprep.mubr.f32.mxu0 0.0
        %450 = vmatmul.mubr.f32.gmra.mrb[0].mxu0 %v371
        %v451 = vpop.f32.mrb[0].mxu0
        %v452 = vadd.f32 0.0, %v451
        %v453 = vpop.f32.mrb[0].mxu0
        %v454 = vadd.f32 0.0, %v453
        %455 = vmatprep.mubr.f32.mxu0 0.0
        %456 = vmatmul.mubr.f32.gmra.mrb[0].mxu0 %v374
        %v457 = vpop.f32.mrb[0].mxu0
        %v458 = vadd.f32 0.0, %v457
        %v459 = vpop.f32.mrb[0].mxu0
        %v460 = vadd.f32 0.0, %v459
        %461 = vmatprep.mubr.f32.mxu0 0.0
        %462 = vmatmul.mubr.f32.gmra.mrb[0].mxu0 %v377
        %v463 = vpop.f32.mrb[0].mxu0
        %v464 = vadd.f32 0.0, %v463
        %v465 = vpop.f32.mrb[0].mxu0
        %v466 = vadd.f32 0.0, %v465
        %467 = vdwg.mxu0
        %v468 = vld [vmem:[%s2] sm:$0xff]
        %v469 = vld [vmem:[%s2 + $0x8] sm:$0xff]
        %v470 = vld [vmem:[%s2 + $0x10] sm:$0xff]
        %v471 = vld [vmem:[%s2 + $0x18] sm:$0xff]
        %473 = vset.pattern.permute.xlu0 0
        %474 = vperm.xlu0 %473, %v468
        %v475 = vpop.permute.xlu0 %474
        %478 = vset.pattern.permute.xlu0 0
        %479 = vperm.xlu0 %478, %v469
        %v480 = vpop.permute.xlu0 %479
        %483 = vset.pattern.permute.xlu0 0
        %484 = vperm.xlu0 %483, %v470
        %v485 = vpop.permute.xlu0 %484
        %488 = vset.pattern.permute.xlu0 0
        %489 = vperm.xlu0 %488, %v471
        %v490 = vpop.permute.xlu0 %489
        %v492 = vmul.f32 %v446, %v475
        %v493 = vmul.f32 %v448, %v475
        %v494 = vmul.f32 %v452, %v480
        %v495 = vmul.f32 %v454, %v480
        %v496 = vmul.f32 %v458, %v485
        %v497 = vmul.f32 %v460, %v485
        %v498 = vmul.f32 %v464, %v490
        %v499 = vmul.f32 %v466, %v490
        %v500 = vld [vmem:[%s3] sm:$0xff]
        %v501 = vld [vmem:[%s3 + $0x8] sm:$0xff]
        %v502 = vld [vmem:[%s3 + $0x10] sm:$0xff]
        %v503 = vld [vmem:[%s3 + $0x18] sm:$0xff]
        %505 = vset.pattern.permute.xlu0 0
        %506 = vperm.xlu0 %505, %v500
        %v507 = vpop.permute.xlu0 %506
        %510 = vset.pattern.permute.xlu0 0
        %511 = vperm.xlu0 %510, %v501
        %v512 = vpop.permute.xlu0 %511
        %515 = vset.pattern.permute.xlu0 0
        %516 = vperm.xlu0 %515, %v502
        %v517 = vpop.permute.xlu0 %516
        %520 = vset.pattern.permute.xlu0 0
        %521 = vperm.xlu0 %520, %v503
        %v522 = vpop.permute.xlu0 %521
        %v524 = vadd.f32 %v492, %v507
        %v525 = vadd.f32 %v493, %v507
        %v526 = vadd.f32 %v494, %v512
        %v527 = vadd.f32 %v495, %v512
        %v528 = vadd.f32 %v496, %v517
        %v529 = vadd.f32 %v497, %v517
        %v530 = vadd.f32 %v498, %v522
        %v531 = vadd.f32 %v499, %v522
        %vm532 = vcmp.ge.f32.partialorder %v524, 0.0
        %vm533 = vcmp.ge.f32.partialorder %v525, 0.0
        %vm534 = vcmp.ge.f32.partialorder %v526, 0.0
        %vm535 = vcmp.ge.f32.partialorder %v527, 0.0
        %vm536 = vcmp.ge.f32.partialorder %v528, 0.0
        %vm537 = vcmp.ge.f32.partialorder %v529, 0.0
        %vm538 = vcmp.ge.f32.partialorder %v530, 0.0
        %vm539 = vcmp.ge.f32.partialorder %v531, 0.0
        %v540 = vmul.f32 %v524, 0.1
        %v541 = vmul.f32 %v525, 0.1
        %v542 = vmul.f32 %v526, 0.1
        %v543 = vmul.f32 %v527, 0.1
        %v544 = vmul.f32 %v528, 0.1
        %v545 = vmul.f32 %v529, 0.1
        %v546 = vmul.f32 %v530, 0.1
        %v547 = vmul.f32 %v531, 0.1
        %v548 = vsel %vm532, %v524, %v540
        %v549 = vsel %vm533, %v525, %v541
        %v550 = vsel %vm534, %v526, %v542
        %v551 = vsel %vm535, %v527, %v543
        %v552 = vsel %vm536, %v528, %v544
        %v553 = vsel %vm537, %v529, %v545
        %v554 = vsel %vm538, %v530, %v546
        %v555 = vsel %vm539, %v531, %v547
        %556 = vxpose.xlu0.b32.start [1/16] %v548, 128
        %557 = vxpose.xlu0.b32.cont [2/16] %v550, 128
        %558 = vxpose.xlu0.b32.cont [3/16] %v552, 128
        %559 = vxpose.xlu0.b32.cont [4/16] %v554, 128
        %560 = vxpose.xlu0.b32.cont [5/16] 0.0, 128
        %561 = vxpose.xlu0.b32.cont [6/16] 0.0, 128
        %562 = vxpose.xlu0.b32.cont [7/16] 0.0, 128
        %563 = vxpose.xlu0.b32.cont [8/16] 0.0, 128
        %564 = vxpose.xlu0.b32.cont [9/16] 0.0, 128
        %565 = vxpose.xlu0.b32.cont [10/16] 0.0, 128
        %566 = vxpose.xlu0.b32.cont [11/16] 0.0, 128
        %567 = vxpose.xlu0.b32.cont [12/16] 0.0, 128
        %568 = vxpose.xlu0.b32.cont [13/16] 0.0, 128
        %569 = vxpose.xlu0.b32.cont [14/16] 0.0, 128
        %570 = vxpose.xlu0.b32.cont [15/16] 0.0, 128
        %571 = vxpose.xlu0.b32.end [16/16] 0.0, 128
        %v572 = vpop.trf.xlu0
        %v573 = vpop.trf.xlu0
        %v574 = vpop.trf.xlu0
        %v575 = vpop.trf.xlu0
        %v576 = vpop.trf.xlu0
        %v577 = vpop.trf.xlu0
        %v578 = vpop.trf.xlu0
        %v579 = vpop.trf.xlu0
        %v580 = vpop.trf.xlu0
        %v581 = vpop.trf.xlu0
        %v582 = vpop.trf.xlu0
        %v583 = vpop.trf.xlu0
        %v584 = vpop.trf.xlu0
        %v585 = vpop.trf.xlu0
        %v586 = vpop.trf.xlu0
        %v587 = vpop.trf.xlu0
        %588 = vxpose.xlu0.b32.start [1/16] %v549, 128
        %589 = vxpose.xlu0.b32.cont [2/16] %v551, 128
        %590 = vxpose.xlu0.b32.cont [3/16] %v553, 128
        %591 = vxpose.xlu0.b32.cont [4/16] %v555, 128
        %592 = vxpose.xlu0.b32.cont [5/16] 0.0, 128
        %593 = vxpose.xlu0.b32.cont [6/16] 0.0, 128
        %594 = vxpose.xlu0.b32.cont [7/16] 0.0, 128
        %595 = vxpose.xlu0.b32.cont [8/16] 0.0, 128
        %596 = vxpose.xlu0.b32.cont [9/16] 0.0, 128
        %597 = vxpose.xlu0.b32.cont [10/16] 0.0, 128
        %598 = vxpose.xlu0.b32.cont [11/16] 0.0, 128
        %599 = vxpose.xlu0.b32.cont [12/16] 0.0, 128
        %600 = vxpose.xlu0.b32.cont [13/16] 0.0, 128
        %601 = vxpose.xlu0.b32.cont [14/16] 0.0, 128
        %602 = vxpose.xlu0.b32.cont [15/16] 0.0, 128
        %603 = vxpose.xlu0.b32.end [16/16] 0.0, 128
        %v604 = vpop.trf.xlu0
        %v605 = vpop.trf.xlu0
        %v606 = vpop.trf.xlu0
        %v607 = vpop.trf.xlu0
        %v608 = vpop.trf.xlu0
        %v609 = vpop.trf.xlu0
        %v610 = vpop.trf.xlu0
        %v611 = vpop.trf.xlu0
        %v612 = vpop.trf.xlu0
        %v613 = vpop.trf.xlu0
        %v614 = vpop.trf.xlu0
        %v615 = vpop.trf.xlu0
        %v616 = vpop.trf.xlu0
        %v617 = vpop.trf.xlu0
        %v618 = vpop.trf.xlu0
        %v619 = vpop.trf.xlu0
        %vm620 = vcmask 261120
        %621 = vst.msk [vmem:[#allocation2] sm:$0xff] %vm620, 0.0
        %622 = vst.msk [vmem:[#allocation2 + $0x8] sm:$0xff] %vm620, 0.0
        %623 = vst.msk [vmem:[#allocation2 + $0x10] sm:$0xff] %vm620, 0.0
        %624 = vst.msk [vmem:[#allocation2 + $0x18] sm:$0xff] %vm620, 0.0
        %625 = vst.msk [vmem:[#allocation2 + $0x20] sm:$0xff] %vm620, 0.0
        %626 = vst.msk [vmem:[#allocation2 + $0x28] sm:$0xff] %vm620, 0.0
        %627 = vst.msk [vmem:[#allocation2 + $0x30] sm:$0xff] %vm620, 0.0
        %628 = vst.msk [vmem:[#allocation2 + $0x38] sm:$0xff] %vm620, 0.0
        %629 = vst.msk [vmem:[#allocation2 + $0x40] sm:$0xff] %vm620, 0.0
        %630 = vst.msk [vmem:[#allocation2 + $0x48] sm:$0xff] %vm620, 0.0
        %631 = vst.msk [vmem:[#allocation2 + $0x50] sm:$0xff] %vm620, 0.0
        %632 = vst.msk [vmem:[#allocation2 + $0x58] sm:$0xff] %vm620, 0.0
        %633 = vst.msk [vmem:[#allocation2 + $0x60] sm:$0xff] %vm620, 0.0
        %634 = vst.msk [vmem:[#allocation2 + $0x68] sm:$0xff] %vm620, 0.0
        %635 = vst.msk [vmem:[#allocation2 + $0x70] sm:$0xff] %vm620, 0.0
        %636 = vst.msk [vmem:[#allocation2 + $0x78] sm:$0xff] %vm620, 0.0
        %637 = vst.msk [vmem:[#allocation2 + $0x80] sm:$0xff] %vm620, 0.0
        %638 = vst.msk [vmem:[#allocation2 + $0x88] sm:$0xff] %vm620, 0.0
        %639 = vst.msk [vmem:[#allocation2 + $0x90] sm:$0xff] %vm620, 0.0
        %640 = vst.msk [vmem:[#allocation2 + $0x98] sm:$0xff] %vm620, 0.0
        %641 = vst.msk [vmem:[#allocation2 + $0xa0] sm:$0xff] %vm620, 0.0
        %642 = vst.msk [vmem:[#allocation2 + $0xa8] sm:$0xff] %vm620, 0.0
        %643 = vst.msk [vmem:[#allocation2 + $0xb0] sm:$0xff] %vm620, 0.0
        %644 = vst.msk [vmem:[#allocation2 + $0xb8] sm:$0xff] %vm620, 0.0
        %645 = vst.msk [vmem:[#allocation2 + $0xc0] sm:$0xff] %vm620, 0.0
        %646 = vst.msk [vmem:[#allocation2 + $0xc8] sm:$0xff] %vm620, 0.0
        %647 = vst.msk [vmem:[#allocation2 + $0xd0] sm:$0xff] %vm620, 0.0
        %648 = vst.msk [vmem:[#allocation2 + $0xd8] sm:$0xff] %vm620, 0.0
        %649 = vst.msk [vmem:[#allocation2 + $0xe0] sm:$0xff] %vm620, 0.0
        %650 = vst.msk [vmem:[#allocation2 + $0xe8] sm:$0xff] %vm620, 0.0
        %651 = vst.msk [vmem:[#allocation2 + $0xf0] sm:$0xff] %vm620, 0.0
        %652 = vst.msk [vmem:[#allocation2 + $0xf8] sm:$0xff] %vm620, 0.0
        %653 = vst.msk [vmem:[#allocation2 + $0x100] sm:$0xff] %vm620, 0.0
        %654 = vst.msk [vmem:[#allocation2 + $0x108] sm:$0xff] %vm620, 0.0
        %655 = vst.msk [vmem:[#allocation2 + $0x110] sm:$0xff] %vm620, 0.0
        %656 = vst.msk [vmem:[#allocation2 + $0x118] sm:$0xff] %vm620, 0.0
        %657 = vst.msk [vmem:[#allocation2 + $0x120] sm:$0xff] %vm620, 0.0
        %658 = vst.msk [vmem:[#allocation2 + $0x128] sm:$0xff] %vm620, 0.0
        %659 = vst.msk [vmem:[#allocation2 + $0x130] sm:$0xff] %vm620, 0.0
        %660 = vst.msk [vmem:[#allocation2 + $0x138] sm:$0xff] %vm620, 0.0
        %661 = vst.msk [vmem:[#allocation2 + $0x140] sm:$0xff] %vm620, 0.0
        %662 = vst.msk [vmem:[#allocation2 + $0x148] sm:$0xff] %vm620, 0.0
        %663 = vst.msk [vmem:[#allocation2 + $0x150] sm:$0xff] %vm620, 0.0
        %664 = vst.msk [vmem:[#allocation2 + $0x158] sm:$0xff] %vm620, 0.0
        %665 = vst.msk [vmem:[#allocation2 + $0x160] sm:$0xff] %vm620, 0.0
        %666 = vst.msk [vmem:[#allocation2 + $0x168] sm:$0xff] %vm620, 0.0
        %667 = vst.msk [vmem:[#allocation2 + $0x170] sm:$0xff] %vm620, 0.0
        %668 = vst.msk [vmem:[#allocation2 + $0x178] sm:$0xff] %vm620, 0.0
        %669 = vst.msk [vmem:[#allocation2 + $0x180] sm:$0xff] %vm620, 0.0
        %670 = vst.msk [vmem:[#allocation2 + $0x188] sm:$0xff] %vm620, 0.0
        %671 = vst.msk [vmem:[#allocation2 + $0x190] sm:$0xff] %vm620, 0.0
        %672 = vst.msk [vmem:[#allocation2 + $0x198] sm:$0xff] %vm620, 0.0
        %673 = vst.msk [vmem:[#allocation2 + $0x1a0] sm:$0xff] %vm620, 0.0
        %674 = vst.msk [vmem:[#allocation2 + $0x1a8] sm:$0xff] %vm620, 0.0
        %675 = vst.msk [vmem:[#allocation2 + $0x1b0] sm:$0xff] %vm620, 0.0
        %676 = vst.msk [vmem:[#allocation2 + $0x1b8] sm:$0xff] %vm620, 0.0
        %677 = vst.msk [vmem:[#allocation2 + $0x1c0] sm:$0xff] %vm620, 0.0
        %678 = vst.msk [vmem:[#allocation2 + $0x1c8] sm:$0xff] %vm620, 0.0
        %679 = vst.msk [vmem:[#allocation2 + $0x1d0] sm:$0xff] %vm620, 0.0
        %680 = vst.msk [vmem:[#allocation2 + $0x1d8] sm:$0xff] %vm620, 0.0
        %681 = vst.msk [vmem:[#allocation2 + $0x1e0] sm:$0xff] %vm620, 0.0
        %682 = vst.msk [vmem:[#allocation2 + $0x1e8] sm:$0xff] %vm620, 0.0
        %683 = vst.msk [vmem:[#allocation2 + $0x1f0] sm:$0xff] %vm620, 0.0
        %684 = vst.msk [vmem:[#allocation2 + $0x1f8] sm:$0xff] %vm620, 0.0
        %685 = vst.msk [vmem:[#allocation2 + $0x200] sm:$0xff] %vm620, 0.0
        %686 = vst.msk [vmem:[#allocation2 + $0x208] sm:$0xff] %vm620, 0.0
        %687 = vst.msk [vmem:[#allocation2 + $0x210] sm:$0xff] %vm620, 0.0
        %688 = vst.msk [vmem:[#allocation2 + $0x218] sm:$0xff] %vm620, 0.0
        %689 = vst.msk [vmem:[#allocation2 + $0x220] sm:$0xff] %vm620, 0.0
        %690 = vst.msk [vmem:[#allocation2 + $0x228] sm:$0xff] %vm620, 0.0
        %691 = vst.msk [vmem:[#allocation2 + $0x230] sm:$0xff] %vm620, 0.0
        %692 = vst.msk [vmem:[#allocation2 + $0x238] sm:$0xff] %vm620, 0.0
        %s693 = scalar_lea.vmem [#allocation2], 32
        %694 = vst.msk [vmem:[%s693 + $0x8] sm:$0xff] %vm620, %v572
        %695 = vst.msk [vmem:[%s693 + $0x10] sm:$0xff] %vm620, %v573
        %696 = vst.msk [vmem:[%s693 + $0x28] sm:$0xff] %vm620, %v574
        %697 = vst.msk [vmem:[%s693 + $0x30] sm:$0xff] %vm620, %v575
        %698 = vst.msk [vmem:[%s693 + $0x48] sm:$0xff] %vm620, %v576
        %699 = vst.msk [vmem:[%s693 + $0x50] sm:$0xff] %vm620, %v577
        %700 = vst.msk [vmem:[%s693 + $0x68] sm:$0xff] %vm620, %v578
        %701 = vst.msk [vmem:[%s693 + $0x70] sm:$0xff] %vm620, %v579
        %702 = vst.msk [vmem:[%s693 + $0x88] sm:$0xff] %vm620, %v580
        %703 = vst.msk [vmem:[%s693 + $0x90] sm:$0xff] %vm620, %v581
        %704 = vst.msk [vmem:[%s693 + $0xa8] sm:$0xff] %vm620, %v582
        %705 = vst.msk [vmem:[%s693 + $0xb0] sm:$0xff] %vm620, %v583
        %706 = vst.msk [vmem:[%s693 + $0xc8] sm:$0xff] %vm620, %v584
        %707 = vst.msk [vmem:[%s693 + $0xd0] sm:$0xff] %vm620, %v585
        %708 = vst.msk [vmem:[%s693 + $0xe8] sm:$0xff] %vm620, %v586
        %709 = vst.msk [vmem:[%s693 + $0xf0] sm:$0xff] %vm620, %v587
        %710 = vst.msk [vmem:[%s693 + $0x108] sm:$0xff] %vm620, %v604
        %711 = vst.msk [vmem:[%s693 + $0x110] sm:$0xff] %vm620, %v605
        %712 = vst.msk [vmem:[%s693 + $0x128] sm:$0xff] %vm620, %v606
        %713 = vst.msk [vmem:[%s693 + $0x130] sm:$0xff] %vm620, %v607
        %714 = vst.msk [vmem:[%s693 + $0x148] sm:$0xff] %vm620, %v608
        %715 = vst.msk [vmem:[%s693 + $0x150] sm:$0xff] %vm620, %v609
        %716 = vst.msk [vmem:[%s693 + $0x168] sm:$0xff] %vm620, %v610
        %717 = vst.msk [vmem:[%s693 + $0x170] sm:$0xff] %vm620, %v611
        %718 = vst.msk [vmem:[%s693 + $0x188] sm:$0xff] %vm620, %v612
        %719 = vst.msk [vmem:[%s693 + $0x190] sm:$0xff] %vm620, %v613
        %720 = vst.msk [vmem:[%s693 + $0x1a8] sm:$0xff] %vm620, %v614
        %721 = vst.msk [vmem:[%s693 + $0x1b0] sm:$0xff] %vm620, %v615
        %722 = vst.msk [vmem:[%s693 + $0x1c8] sm:$0xff] %vm620, %v616
        %723 = vst.msk [vmem:[%s693 + $0x1d0] sm:$0xff] %vm620, %v617
        %724 = vst.msk [vmem:[%s693 + $0x1e8] sm:$0xff] %vm620, %v618
        %725 = vst.msk [vmem:[%s693 + $0x1f0] sm:$0xff] %vm620, %v619
        %v726 = vld [vmem:[#allocation2] sm:$0xff]
        %v727 = vld [vmem:[#allocation2 + $0x8] sm:$0xff]
        %v728 = vld [vmem:[#allocation2 + $0x10] sm:$0xff]
        %v729 = vld [vmem:[#allocation2 + $0x18] sm:$0xff]
        %v730 = vld [vmem:[#allocation2 + $0x20] sm:$0xff]
        %v731 = vld [vmem:[#allocation2 + $0x28] sm:$0xff]
        %v732 = vld [vmem:[#allocation2 + $0x30] sm:$0xff]
        %v733 = vld [vmem:[#allocation2 + $0x38] sm:$0xff]
        %v734 = vld [vmem:[#allocation2 + $0x40] sm:$0xff]
        %v735 = vld [vmem:[#allocation2 + $0x48] sm:$0xff]
        %v736 = vld [vmem:[#allocation2 + $0x50] sm:$0xff]
        %v737 = vld [vmem:[#allocation2 + $0x58] sm:$0xff]
        %v738 = vld [vmem:[#allocation2 + $0x60] sm:$0xff]
        %v739 = vld [vmem:[#allocation2 + $0x68] sm:$0xff]
        %v740 = vld [vmem:[#allocation2 + $0x70] sm:$0xff]
        %v741 = vld [vmem:[#allocation2 + $0x78] sm:$0xff]
        %v742 = vld [vmem:[#allocation2 + $0x80] sm:$0xff]
        %v743 = vld [vmem:[#allocation2 + $0x88] sm:$0xff]
        %v744 = vld [vmem:[#allocation2 + $0x90] sm:$0xff]
        %v745 = vld [vmem:[#allocation2 + $0x98] sm:$0xff]
        %v746 = vld [vmem:[#allocation2 + $0xa0] sm:$0xff]
        %v747 = vld [vmem:[#allocation2 + $0xa8] sm:$0xff]
        %v748 = vld [vmem:[#allocation2 + $0xb0] sm:$0xff]
        %v749 = vld [vmem:[#allocation2 + $0xb8] sm:$0xff]
        %v750 = vld [vmem:[#allocation2 + $0xc0] sm:$0xff]
        %v751 = vld [vmem:[#allocation2 + $0xc8] sm:$0xff]
        %v752 = vld [vmem:[#allocation2 + $0xd0] sm:$0xff]
        %v753 = vld [vmem:[#allocation2 + $0xd8] sm:$0xff]
        %v754 = vld [vmem:[#allocation2 + $0xe0] sm:$0xff]
        %v755 = vld [vmem:[#allocation2 + $0xe8] sm:$0xff]
        %v756 = vld [vmem:[#allocation2 + $0xf0] sm:$0xff]
        %v757 = vld [vmem:[#allocation2 + $0xf8] sm:$0xff]
        %v758 = vld [vmem:[#allocation2 + $0x100] sm:$0xff]
        %v759 = vld [vmem:[#allocation2 + $0x108] sm:$0xff]
        %v760 = vld [vmem:[#allocation2 + $0x110] sm:$0xff]
        %v761 = vld [vmem:[#allocation2 + $0x118] sm:$0xff]
        %v762 = vld [vmem:[#allocation2 + $0x120] sm:$0xff]
        %v763 = vld [vmem:[#allocation2 + $0x128] sm:$0xff]
        %v764 = vld [vmem:[#allocation2 + $0x130] sm:$0xff]
        %v765 = vld [vmem:[#allocation2 + $0x138] sm:$0xff]
        %v766 = vld [vmem:[#allocation2 + $0x140] sm:$0xff]
        %v767 = vld [vmem:[#allocation2 + $0x148] sm:$0xff]
        %v768 = vld [vmem:[#allocation2 + $0x150] sm:$0xff]
        %v769 = vld [vmem:[#allocation2 + $0x158] sm:$0xff]
        %v770 = vld [vmem:[#allocation2 + $0x160] sm:$0xff]
        %v771 = vld [vmem:[#allocation2 + $0x168] sm:$0xff]
        %v772 = vld [vmem:[#allocation2 + $0x170] sm:$0xff]
        %v773 = vld [vmem:[#allocation2 + $0x178] sm:$0xff]
        %v774 = vld [vmem:[#allocation2 + $0x180] sm:$0xff]
        %v775 = vld [vmem:[#allocation2 + $0x188] sm:$0xff]
        %v776 = vld [vmem:[#allocation2 + $0x190] sm:$0xff]
        %v777 = vld [vmem:[#allocation2 + $0x198] sm:$0xff]
        %v778 = vld [vmem:[#allocation2 + $0x1a0] sm:$0xff]
        %v779 = vld [vmem:[#allocation2 + $0x1a8] sm:$0xff]
        %v780 = vld [vmem:[#allocation2 + $0x1b0] sm:$0xff]
        %v781 = vld [vmem:[#allocation2 + $0x1b8] sm:$0xff]
        %v782 = vld [vmem:[#allocation2 + $0x1c0] sm:$0xff]
        %v783 = vld [vmem:[#allocation2 + $0x1c8] sm:$0xff]
        %v784 = vld [vmem:[#allocation2 + $0x1d0] sm:$0xff]
        %v785 = vld [vmem:[#allocation2 + $0x1d8] sm:$0xff]
        %v786 = vld [vmem:[#allocation2 + $0x1e0] sm:$0xff]
        %v787 = vld [vmem:[#allocation2 + $0x1e8] sm:$0xff]
        %v788 = vld [vmem:[#allocation2 + $0x1f0] sm:$0xff]
        %v789 = vld [vmem:[#allocation2 + $0x1f8] sm:$0xff]
        %v790 = vld [vmem:[#allocation2 + $0x200] sm:$0xff]
        %v791 = vld [vmem:[#allocation2 + $0x208] sm:$0xff]
        %v792 = vld [vmem:[#allocation2 + $0x210] sm:$0xff]
        %v793 = vld [vmem:[#allocation2 + $0x218] sm:$0xff]
        %v794 = vld [vmem:[#allocation2 + $0x220] sm:$0xff]
        %v795 = vld [vmem:[#allocation2 + $0x228] sm:$0xff]
        %v796 = vld [vmem:[#allocation2 + $0x230] sm:$0xff]
        %v797 = vld [vmem:[#allocation2 + $0x238] sm:$0xff]
        %v798 = vld [vmem:[%s4] sm:$0xff]
        %v799 = vld [vmem:[%s4 + $0x8] sm:$0x1]
        %v800 = vlaneseq
        %v801 = vshrl.u32 %v800, 7
        %v802 = vsub.s32 0, %v801
        %v803 = vrot.slane %v798, %v802
        %v804 = vmul.f32 %v726, %v803
        %v805 = vmul.f32 %v727, %v803
        %v806 = vmul.f32 %v728, %v803
        %v807 = vmul.f32 %v730, %v803
        %v808 = vmul.f32 %v731, %v803
        %v809 = vmul.f32 %v732, %v803
        %v810 = vmul.f32 %v734, %v803
        %v811 = vmul.f32 %v735, %v803
        %v812 = vmul.f32 %v736, %v803
        %v813 = vmul.f32 %v738, %v803
        %v814 = vmul.f32 %v739, %v803
        %v815 = vmul.f32 %v740, %v803
        %v816 = vmul.f32 %v742, %v803
        %v817 = vmul.f32 %v743, %v803
        %v818 = vmul.f32 %v744, %v803
        %v819 = vmul.f32 %v746, %v803
        %v820 = vmul.f32 %v747, %v803
        %v821 = vmul.f32 %v748, %v803
        %v822 = vmul.f32 %v750, %v803
        %v823 = vmul.f32 %v751, %v803
        %v824 = vmul.f32 %v752, %v803
        %v825 = vmul.f32 %v754, %v803
        %v826 = vmul.f32 %v755, %v803
        %v827 = vmul.f32 %v756, %v803
        %v828 = vmul.f32 %v758, %v803
        %v829 = vmul.f32 %v759, %v803
        %v830 = vmul.f32 %v760, %v803
        %v831 = vmul.f32 %v762, %v803
        %v832 = vmul.f32 %v763, %v803
        %v833 = vmul.f32 %v764, %v803
        %v834 = vmul.f32 %v766, %v803
        %v835 = vmul.f32 %v767, %v803
        %v836 = vmul.f32 %v768, %v803
        %v837 = vmul.f32 %v770, %v803
        %v838 = vmul.f32 %v771, %v803
        %v839 = vmul.f32 %v772, %v803
        %v840 = vmul.f32 %v774, %v803
        %v841 = vmul.f32 %v775, %v803
        %v842 = vmul.f32 %v776, %v803
        %v843 = vmul.f32 %v778, %v803
        %v844 = vmul.f32 %v779, %v803
        %v845 = vmul.f32 %v780, %v803
        %v846 = vmul.f32 %v782, %v803
        %v847 = vmul.f32 %v783, %v803
        %v848 = vmul.f32 %v784, %v803
        %v849 = vmul.f32 %v786, %v803
        %v850 = vmul.f32 %v787, %v803
        %v851 = vmul.f32 %v788, %v803
        %v852 = vlaneseq
        %v853 = vshrl.u32 %v852, 7
        %v854 = vsub.s32 1, %v853
        %v855 = vrot.slane %v798, %v854
        %v856 = vmul.f32 %v727, %v855
        %v857 = vmul.f32 %v728, %v855
        %v858 = vmul.f32 %v731, %v855
        %v859 = vmul.f32 %v732, %v855
        %v860 = vmul.f32 %v735, %v855
        %v861 = vmul.f32 %v736, %v855
        %v862 = vmul.f32 %v739, %v855
        %v863 = vmul.f32 %v740, %v855
        %v864 = vmul.f32 %v743, %v855
        %v865 = vmul.f32 %v744, %v855
        %v866 = vmul.f32 %v747, %v855
        %v867 = vmul.f32 %v748, %v855
        %v868 = vmul.f32 %v751, %v855
        %v869 = vmul.f32 %v752, %v855
        %v870 = vmul.f32 %v755, %v855
        %v871 = vmul.f32 %v756, %v855
        %v872 = vmul.f32 %v759, %v855
        %v873 = vmul.f32 %v760, %v855
        %v874 = vmul.f32 %v763, %v855
        %v875 = vmul.f32 %v764, %v855
        %v876 = vmul.f32 %v767, %v855
        %v877 = vmul.f32 %v768, %v855
        %v878 = vmul.f32 %v771, %v855
        %v879 = vmul.f32 %v772, %v855
        %v880 = vmul.f32 %v775, %v855
        %v881 = vmul.f32 %v776, %v855
        %v882 = vmul.f32 %v779, %v855
        %v883 = vmul.f32 %v780, %v855
        %v884 = vmul.f32 %v783, %v855
        %v885 = vmul.f32 %v784, %v855
        %v886 = vmul.f32 %v787, %v855
        %v887 = vmul.f32 %v788, %v855
        %vm920 = vcmask 1046528
        %v921 = vrot.slane %v856, 1
        %v922 = vrot.slane %v857, 1
        %v923 = vsel %vm920, %v921, %v922
        %v924 = vrot.slane %v858, 1
        %v925 = vrot.slane %v859, 1
        %v926 = vsel %vm920, %v924, %v925
        %v927 = vrot.slane %v860, 1
        %v928 = vrot.slane %v861, 1
        %v929 = vsel %vm920, %v927, %v928
        %v930 = vrot.slane %v862, 1
        %v931 = vrot.slane %v863, 1
        %v932 = vsel %vm920, %v930, %v931
        %v933 = vrot.slane %v864, 1
        %v934 = vrot.slane %v865, 1
        %v935 = vsel %vm920, %v933, %v934
        %v936 = vrot.slane %v866, 1
        %v937 = vrot.slane %v867, 1
        %v938 = vsel %vm920, %v936, %v937
        %v939 = vrot.slane %v868, 1
        %v940 = vrot.slane %v869, 1
        %v941 = vsel %vm920, %v939, %v940
        %v942 = vrot.slane %v870, 1
        %v943 = vrot.slane %v871, 1
        %v944 = vsel %vm920, %v942, %v943
        %v945 = vrot.slane %v872, 1
        %v946 = vrot.slane %v873, 1
        %v947 = vsel %vm920, %v945, %v946
        %v948 = vrot.slane %v874, 1
        %v949 = vrot.slane %v875, 1
        %v950 = vsel %vm920, %v948, %v949
        %v951 = vrot.slane %v876, 1
        %v952 = vrot.slane %v877, 1
        %v953 = vsel %vm920, %v951, %v952
        %v954 = vrot.slane %v878, 1
        %v955 = vrot.slane %v879, 1
        %v956 = vsel %vm920, %v954, %v955
        %v957 = vrot.slane %v880, 1
        %v958 = vrot.slane %v881, 1
        %v959 = vsel %vm920, %v957, %v958
        %v960 = vrot.slane %v882, 1
        %v961 = vrot.slane %v883, 1
        %v962 = vsel %vm920, %v960, %v961
        %v963 = vrot.slane %v884, 1
        %v964 = vrot.slane %v885, 1
        %v965 = vsel %vm920, %v963, %v964
        %v966 = vrot.slane %v886, 1
        %v967 = vrot.slane %v887, 1
        %v968 = vsel %vm920, %v966, %v967
        %v1017 = vadd.f32 %v804, %v921
        %v1018 = vadd.f32 %v805, %v923
        %v1019 = vadd.f32 %v806, %v922
        %v1020 = vadd.f32 %v807, %v924
        %v1021 = vadd.f32 %v808, %v926
        %v1022 = vadd.f32 %v809, %v925
        %v1023 = vadd.f32 %v810, %v927
        %v1024 = vadd.f32 %v811, %v929
        %v1025 = vadd.f32 %v812, %v928
        %v1026 = vadd.f32 %v813, %v930
        %v1027 = vadd.f32 %v814, %v932
        %v1028 = vadd.f32 %v815, %v931
        %v1029 = vadd.f32 %v816, %v933
        %v1030 = vadd.f32 %v817, %v935
        %v1031 = vadd.f32 %v818, %v934
        %v1032 = vadd.f32 %v819, %v936
        %v1033 = vadd.f32 %v820, %v938
        %v1034 = vadd.f32 %v821, %v937
        %v1035 = vadd.f32 %v822, %v939
        %v1036 = vadd.f32 %v823, %v941
        %v1037 = vadd.f32 %v824, %v940
        %v1038 = vadd.f32 %v825, %v942
        %v1039 = vadd.f32 %v826, %v944
        %v1040 = vadd.f32 %v827, %v943
        %v1041 = vadd.f32 %v828, %v945
        %v1042 = vadd.f32 %v829, %v947
        %v1043 = vadd.f32 %v830, %v946
        %v1044 = vadd.f32 %v831, %v948
        %v1045 = vadd.f32 %v832, %v950
        %v1046 = vadd.f32 %v833, %v949
        %v1047 = vadd.f32 %v834, %v951
        %v1048 = vadd.f32 %v835, %v953
        %v1049 = vadd.f32 %v836, %v952
        %v1050 = vadd.f32 %v837, %v954
        %v1051 = vadd.f32 %v838, %v956
        %v1052 = vadd.f32 %v839, %v955
        %v1053 = vadd.f32 %v840, %v957
        %v1054 = vadd.f32 %v841, %v959
        %v1055 = vadd.f32 %v842, %v958
        %v1056 = vadd.f32 %v843, %v960
        %v1057 = vadd.f32 %v844, %v962
        %v1058 = vadd.f32 %v845, %v961
        %v1059 = vadd.f32 %v846, %v963
        %v1060 = vadd.f32 %v847, %v965
        %v1061 = vadd.f32 %v848, %v964
        %v1062 = vadd.f32 %v849, %v966
        %v1063 = vadd.f32 %v850, %v968
        %v1064 = vadd.f32 %v851, %v967
        %v1065 = vlaneseq
        %v1066 = vshrl.u32 %v1065, 7
        %v1067 = vsub.s32 2, %v1066
        %v1068 = vrot.slane %v798, %v1067
        %v1069 = vmul.f32 %v727, %v1068
        %v1070 = vmul.f32 %v728, %v1068
        %v1071 = vmul.f32 %v729, %v1068
        %v1072 = vmul.f32 %v731, %v1068
        %v1073 = vmul.f32 %v732, %v1068
        %v1074 = vmul.f32 %v733, %v1068
        %v1075 = vmul.f32 %v735, %v1068
        %v1076 = vmul.f32 %v736, %v1068
        %v1077 = vmul.f32 %v737, %v1068
        %v1078 = vmul.f32 %v739, %v1068
        %v1079 = vmul.f32 %v740, %v1068
        %v1080 = vmul.f32 %v741, %v1068
        %v1081 = vmul.f32 %v743, %v1068
        %v1082 = vmul.f32 %v744, %v1068
        %v1083 = vmul.f32 %v745, %v1068
        %v1084 = vmul.f32 %v747, %v1068
        %v1085 = vmul.f32 %v748, %v1068
        %v1086 = vmul.f32 %v749, %v1068
        %v1087 = vmul.f32 %v751, %v1068
        %v1088 = vmul.f32 %v752, %v1068
        %v1089 = vmul.f32 %v753, %v1068
        %v1090 = vmul.f32 %v755, %v1068
        %v1091 = vmul.f32 %v756, %v1068
        %v1092 = vmul.f32 %v757, %v1068
        %v1093 = vmul.f32 %v759, %v1068
        %v1094 = vmul.f32 %v760, %v1068
        %v1095 = vmul.f32 %v761, %v1068
        %v1096 = vmul.f32 %v763, %v1068
        %v1097 = vmul.f32 %v764, %v1068
        %v1098 = vmul.f32 %v765, %v1068
        %v1099 = vmul.f32 %v767, %v1068
        %v1100 = vmul.f32 %v768, %v1068
        %v1101 = vmul.f32 %v769, %v1068
        %v1102 = vmul.f32 %v771, %v1068
        %v1103 = vmul.f32 %v772, %v1068
        %v1104 = vmul.f32 %v773, %v1068
        %v1105 = vmul.f32 %v775, %v1068
        %v1106 = vmul.f32 %v776, %v1068
        %v1107 = vmul.f32 %v777, %v1068
        %v1108 = vmul.f32 %v779, %v1068
        %v1109 = vmul.f32 %v780, %v1068
        %v1110 = vmul.f32 %v781, %v1068
        %v1111 = vmul.f32 %v783, %v1068
        %v1112 = vmul.f32 %v784, %v1068
        %v1113 = vmul.f32 %v785, %v1068
        %v1114 = vmul.f32 %v787, %v1068
        %v1115 = vmul.f32 %v788, %v1068
        %v1116 = vmul.f32 %v789, %v1068
        %vm1165 = vcmask 1045504
        %v1166 = vrot.slane %v1069, 2
        %v1167 = vrot.slane %v1070, 2
        %v1168 = vsel %vm1165, %v1166, %v1167
        %v1169 = vrot.slane %v1071, 2
        %v1170 = vsel %vm1165, %v1167, %v1169
        %v1171 = vrot.slane %v1072, 2
        %v1172 = vrot.slane %v1073, 2
        %v1173 = vsel %vm1165, %v1171, %v1172
        %v1174 = vrot.slane %v1074, 2
        %v1175 = vsel %vm1165, %v1172, %v1174
        %v1176 = vrot.slane %v1075, 2
        %v1177 = vrot.slane %v1076, 2
        %v1178 = vsel %vm1165, %v1176, %v1177
        %v1179 = vrot.slane %v1077, 2
        %v1180 = vsel %vm1165, %v1177, %v1179
        %v1181 = vrot.slane %v1078, 2
        %v1182 = vrot.slane %v1079, 2
        %v1183 = vsel %vm1165, %v1181, %v1182
        %v1184 = vrot.slane %v1080, 2
        %v1185 = vsel %vm1165, %v1182, %v1184
        %v1186 = vrot.slane %v1081, 2
        %v1187 = vrot.slane %v1082, 2
        %v1188 = vsel %vm1165, %v1186, %v1187
        %v1189 = vrot.slane %v1083, 2
        %v1190 = vsel %vm1165, %v1187, %v1189
        %v1191 = vrot.slane %v1084, 2
        %v1192 = vrot.slane %v1085, 2
        %v1193 = vsel %vm1165, %v1191, %v1192
        %v1194 = vrot.slane %v1086, 2
        %v1195 = vsel %vm1165, %v1192, %v1194
        %v1196 = vrot.slane %v1087, 2
        %v1197 = vrot.slane %v1088, 2
        %v1198 = vsel %vm1165, %v1196, %v1197
        %v1199 = vrot.slane %v1089, 2
        %v1200 = vsel %vm1165, %v1197, %v1199
        %v1201 = vrot.slane %v1090, 2
        %v1202 = vrot.slane %v1091, 2
        %v1203 = vsel %vm1165, %v1201, %v1202
        %v1204 = vrot.slane %v1092, 2
        %v1205 = vsel %vm1165, %v1202, %v1204
        %v1206 = vrot.slane %v1093, 2
        %v1207 = vrot.slane %v1094, 2
        %v1208 = vsel %vm1165, %v1206, %v1207
        %v1209 = vrot.slane %v1095, 2
        %v1210 = vsel %vm1165, %v1207, %v1209
        %v1211 = vrot.slane %v1096, 2
        %v1212 = vrot.slane %v1097, 2
        %v1213 = vsel %vm1165, %v1211, %v1212
        %v1214 = vrot.slane %v1098, 2
        %v1215 = vsel %vm1165, %v1212, %v1214
        %v1216 = vrot.slane %v1099, 2
        %v1217 = vrot.slane %v1100, 2
        %v1218 = vsel %vm1165, %v1216, %v1217
        %v1219 = vrot.slane %v1101, 2
        %v1220 = vsel %vm1165, %v1217, %v1219
        %v1221 = vrot.slane %v1102, 2
        %v1222 = vrot.slane %v1103, 2
        %v1223 = vsel %vm1165, %v1221, %v1222
        %v1224 = vrot.slane %v1104, 2
        %v1225 = vsel %vm1165, %v1222, %v1224
        %v1226 = vrot.slane %v1105, 2
        %v1227 = vrot.slane %v1106, 2
        %v1228 = vsel %vm1165, %v1226, %v1227
        %v1229 = vrot.slane %v1107, 2
        %v1230 = vsel %vm1165, %v1227, %v1229
        %v1231 = vrot.slane %v1108, 2
        %v1232 = vrot.slane %v1109, 2
        %v1233 = vsel %vm1165, %v1231, %v1232
        %v1234 = vrot.slane %v1110, 2
        %v1235 = vsel %vm1165, %v1232, %v1234
        %v1236 = vrot.slane %v1111, 2
        %v1237 = vrot.slane %v1112, 2
        %v1238 = vsel %vm1165, %v1236, %v1237
        %v1239 = vrot.slane %v1113, 2
        %v1240 = vsel %vm1165, %v1237, %v1239
        %v1241 = vrot.slane %v1114, 2
        %v1242 = vrot.slane %v1115, 2
        %v1243 = vsel %vm1165, %v1241, %v1242
        %v1244 = vrot.slane %v1116, 2
        %v1245 = vsel %vm1165, %v1242, %v1244
        %v1294 = vadd.f32 %v1017, %v1166
        %v1295 = vadd.f32 %v1018, %v1168
        %v1296 = vadd.f32 %v1019, %v1170
        %v1297 = vadd.f32 %v1020, %v1171
        %v1298 = vadd.f32 %v1021, %v1173
        %v1299 = vadd.f32 %v1022, %v1175
        %v1300 = vadd.f32 %v1023, %v1176
        %v1301 = vadd.f32 %v1024, %v1178
        %v1302 = vadd.f32 %v1025, %v1180
        %v1303 = vadd.f32 %v1026, %v1181
        %v1304 = vadd.f32 %v1027, %v1183
        %v1305 = vadd.f32 %v1028, %v1185
        %v1306 = vadd.f32 %v1029, %v1186
        %v1307 = vadd.f32 %v1030, %v1188
        %v1308 = vadd.f32 %v1031, %v1190
        %v1309 = vadd.f32 %v1032, %v1191
        %v1310 = vadd.f32 %v1033, %v1193
        %v1311 = vadd.f32 %v1034, %v1195
        %v1312 = vadd.f32 %v1035, %v1196
        %v1313 = vadd.f32 %v1036, %v1198
        %v1314 = vadd.f32 %v1037, %v1200
        %v1315 = vadd.f32 %v1038, %v1201
        %v1316 = vadd.f32 %v1039, %v1203
        %v1317 = vadd.f32 %v1040, %v1205
        %v1318 = vadd.f32 %v1041, %v1206
        %v1319 = vadd.f32 %v1042, %v1208
        %v1320 = vadd.f32 %v1043, %v1210
        %v1321 = vadd.f32 %v1044, %v1211
        %v1322 = vadd.f32 %v1045, %v1213
        %v1323 = vadd.f32 %v1046, %v1215
        %v1324 = vadd.f32 %v1047, %v1216
        %v1325 = vadd.f32 %v1048, %v1218
        %v1326 = vadd.f32 %v1049, %v1220
        %v1327 = vadd.f32 %v1050, %v1221
        %v1328 = vadd.f32 %v1051, %v1223
        %v1329 = vadd.f32 %v1052, %v1225
        %v1330 = vadd.f32 %v1053, %v1226
        %v1331 = vadd.f32 %v1054, %v1228
        %v1332 = vadd.f32 %v1055, %v1230
        %v1333 = vadd.f32 %v1056, %v1231
        %v1334 = vadd.f32 %v1057, %v1233
        %v1335 = vadd.f32 %v1058, %v1235
        %v1336 = vadd.f32 %v1059, %v1236
        %v1337 = vadd.f32 %v1060, %v1238
        %v1338 = vadd.f32 %v1061, %v1240
        %v1339 = vadd.f32 %v1062, %v1241
        %v1340 = vadd.f32 %v1063, %v1243
        %v1341 = vadd.f32 %v1064, %v1245
        %v1342 = vlaneseq
        %v1343 = vshrl.u32 %v1342, 7
        %v1344 = vsub.s32 3, %v1343
        %v1345 = vrot.slane %v798, %v1344
        %v1346 = vmul.f32 %v730, %v1345
        %v1347 = vmul.f32 %v731, %v1345
        %v1348 = vmul.f32 %v732, %v1345
        %v1349 = vmul.f32 %v734, %v1345
        %v1350 = vmul.f32 %v735, %v1345
        %v1351 = vmul.f32 %v736, %v1345
        %v1352 = vmul.f32 %v738, %v1345
        %v1353 = vmul.f32 %v739, %v1345
        %v1354 = vmul.f32 %v740, %v1345
        %v1355 = vmul.f32 %v742, %v1345
        %v1356 = vmul.f32 %v743, %v1345
        %v1357 = vmul.f32 %v744, %v1345
        %v1358 = vmul.f32 %v746, %v1345
        %v1359 = vmul.f32 %v747, %v1345
        %v1360 = vmul.f32 %v748, %v1345
        %v1361 = vmul.f32 %v750, %v1345
        %v1362 = vmul.f32 %v751, %v1345
        %v1363 = vmul.f32 %v752, %v1345
        %v1364 = vmul.f32 %v754, %v1345
        %v1365 = vmul.f32 %v755, %v1345
        %v1366 = vmul.f32 %v756, %v1345
        %v1367 = vmul.f32 %v758, %v1345
        %v1368 = vmul.f32 %v759, %v1345
        %v1369 = vmul.f32 %v760, %v1345
        %v1370 = vmul.f32 %v762, %v1345
        %v1371 = vmul.f32 %v763, %v1345
        %v1372 = vmul.f32 %v764, %v1345
        %v1373 = vmul.f32 %v766, %v1345
        %v1374 = vmul.f32 %v767, %v1345
        %v1375 = vmul.f32 %v768, %v1345
        %v1376 = vmul.f32 %v770, %v1345
        %v1377 = vmul.f32 %v771, %v1345
        %v1378 = vmul.f32 %v772, %v1345
        %v1379 = vmul.f32 %v774, %v1345
        %v1380 = vmul.f32 %v775, %v1345
        %v1381 = vmul.f32 %v776, %v1345
        %v1382 = vmul.f32 %v778, %v1345
        %v1383 = vmul.f32 %v779, %v1345
        %v1384 = vmul.f32 %v780, %v1345
        %v1385 = vmul.f32 %v782, %v1345
        %v1386 = vmul.f32 %v783, %v1345
        %v1387 = vmul.f32 %v784, %v1345
        %v1388 = vmul.f32 %v786, %v1345
        %v1389 = vmul.f32 %v787, %v1345
        %v1390 = vmul.f32 %v788, %v1345
        %v1391 = vmul.f32 %v790, %v1345
        %v1392 = vmul.f32 %v791, %v1345
        %v1393 = vmul.f32 %v792, %v1345
        %v1394 = vadd.f32 %v1294, %v1346
        %v1395 = vadd.f32 %v1295, %v1347
        %v1396 = vadd.f32 %v1296, %v1348
        %v1397 = vadd.f32 %v1297, %v1349
        %v1398 = vadd.f32 %v1298, %v1350
        %v1399 = vadd.f32 %v1299, %v1351
        %v1400 = vadd.f32 %v1300, %v1352
        %v1401 = vadd.f32 %v1301, %v1353
        %v1402 = vadd.f32 %v1302, %v1354
        %v1403 = vadd.f32 %v1303, %v1355
        %v1404 = vadd.f32 %v1304, %v1356
        %v1405 = vadd.f32 %v1305, %v1357
        %v1406 = vadd.f32 %v1306, %v1358
        %v1407 = vadd.f32 %v1307, %v1359
        %v1408 = vadd.f32 %v1308, %v1360
        %v1409 = vadd.f32 %v1309, %v1361
        %v1410 = vadd.f32 %v1310, %v1362
        %v1411 = vadd.f32 %v1311, %v1363
        %v1412 = vadd.f32 %v1312, %v1364
        %v1413 = vadd.f32 %v1313, %v1365
        %v1414 = vadd.f32 %v1314, %v1366
        %v1415 = vadd.f32 %v1315, %v1367
        %v1416 = vadd.f32 %v1316, %v1368
        %v1417 = vadd.f32 %v1317, %v1369
        %v1418 = vadd.f32 %v1318, %v1370
        %v1419 = vadd.f32 %v1319, %v1371
        %v1420 = vadd.f32 %v1320, %v1372
        %v1421 = vadd.f32 %v1321, %v1373
        %v1422 = vadd.f32 %v1322, %v1374
        %v1423 = vadd.f32 %v1323, %v1375
        %v1424 = vadd.f32 %v1324, %v1376
        %v1425 = vadd.f32 %v1325, %v1377
        %v1426 = vadd.f32 %v1326, %v1378
        %v1427 = vadd.f32 %v1327, %v1379
        %v1428 = vadd.f32 %v1328, %v1380
        %v1429 = vadd.f32 %v1329, %v1381
        %v1430 = vadd.f32 %v1330, %v1382
        %v1431 = vadd.f32 %v1331, %v1383
        %v1432 = vadd.f32 %v1332, %v1384
        %v1433 = vadd.f32 %v1333, %v1385
        %v1434 = vadd.f32 %v1334, %v1386
        %v1435 = vadd.f32 %v1335, %v1387
        %v1436 = vadd.f32 %v1336, %v1388
        %v1437 = vadd.f32 %v1337, %v1389
        %v1438 = vadd.f32 %v1338, %v1390
        %v1439 = vadd.f32 %v1339, %v1391
        %v1440 = vadd.f32 %v1340, %v1392
        %v1441 = vadd.f32 %v1341, %v1393
        %v1442 = vlaneseq
        %v1443 = vshrl.u32 %v1442, 7
        %v1444 = vsub.s32 4, %v1443
        %v1445 = vrot.slane %v798, %v1444
        %v1446 = vmul.f32 %v731, %v1445
        %v1447 = vmul.f32 %v732, %v1445
        %v1448 = vmul.f32 %v735, %v1445
        %v1449 = vmul.f32 %v736, %v1445
        %v1450 = vmul.f32 %v739, %v1445
        %v1451 = vmul.f32 %v740, %v1445
        %v1452 = vmul.f32 %v743, %v1445
        %v1453 = vmul.f32 %v744, %v1445
        %v1454 = vmul.f32 %v747, %v1445
        %v1455 = vmul.f32 %v748, %v1445
        %v1456 = vmul.f32 %v751, %v1445
        %v1457 = vmul.f32 %v752, %v1445
        %v1458 = vmul.f32 %v755, %v1445
        %v1459 = vmul.f32 %v756, %v1445
        %v1460 = vmul.f32 %v759, %v1445
        %v1461 = vmul.f32 %v760, %v1445
        %v1462 = vmul.f32 %v763, %v1445
        %v1463 = vmul.f32 %v764, %v1445
        %v1464 = vmul.f32 %v767, %v1445
        %v1465 = vmul.f32 %v768, %v1445
        %v1466 = vmul.f32 %v771, %v1445
        %v1467 = vmul.f32 %v772, %v1445
        %v1468 = vmul.f32 %v775, %v1445
        %v1469 = vmul.f32 %v776, %v1445
        %v1470 = vmul.f32 %v779, %v1445
        %v1471 = vmul.f32 %v780, %v1445
        %v1472 = vmul.f32 %v783, %v1445
        %v1473 = vmul.f32 %v784, %v1445
        %v1474 = vmul.f32 %v787, %v1445
        %v1475 = vmul.f32 %v788, %v1445
        %v1476 = vmul.f32 %v791, %v1445
        %v1477 = vmul.f32 %v792, %v1445
        %v1510 = vrot.slane %v1446, 1
        %v1511 = vrot.slane %v1447, 1
        %v1512 = vsel %vm920, %v1510, %v1511
        %v1513 = vrot.slane %v1448, 1
        %v1514 = vrot.slane %v1449, 1
        %v1515 = vsel %vm920, %v1513, %v1514
        %v1516 = vrot.slane %v1450, 1
        %v1517 = vrot.slane %v1451, 1
        %v1518 = vsel %vm920, %v1516, %v1517
        %v1519 = vrot.slane %v1452, 1
        %v1520 = vrot.slane %v1453, 1
        %v1521 = vsel %vm920, %v1519, %v1520
        %v1522 = vrot.slane %v1454, 1
        %v1523 = vrot.slane %v1455, 1
        %v1524 = vsel %vm920, %v1522, %v1523
        %v1525 = vrot.slane %v1456, 1
        %v1526 = vrot.slane %v1457, 1
        %v1527 = vsel %vm920, %v1525, %v1526
        %v1528 = vrot.slane %v1458, 1
        %v1529 = vrot.slane %v1459, 1
        %v1530 = vsel %vm920, %v1528, %v1529
        %v1531 = vrot.slane %v1460, 1
        %v1532 = vrot.slane %v1461, 1
        %v1533 = vsel %vm920, %v1531, %v1532
        %v1534 = vrot.slane %v1462, 1
        %v1535 = vrot.slane %v1463, 1
        %v1536 = vsel %vm920, %v1534, %v1535
        %v1537 = vrot.slane %v1464, 1
        %v1538 = vrot.slane %v1465, 1
        %v1539 = vsel %vm920, %v1537, %v1538
        %v1540 = vrot.slane %v1466, 1
        %v1541 = vrot.slane %v1467, 1
        %v1542 = vsel %vm920, %v1540, %v1541
        %v1543 = vrot.slane %v1468, 1
        %v1544 = vrot.slane %v1469, 1
        %v1545 = vsel %vm920, %v1543, %v1544
        %v1546 = vrot.slane %v1470, 1
        %v1547 = vrot.slane %v1471, 1
        %v1548 = vsel %vm920, %v1546, %v1547
        %v1549 = vrot.slane %v1472, 1
        %v1550 = vrot.slane %v1473, 1
        %v1551 = vsel %vm920, %v1549, %v1550
        %v1552 = vrot.slane %v1474, 1
        %v1553 = vrot.slane %v1475, 1
        %v1554 = vsel %vm920, %v1552, %v1553
        %v1555 = vrot.slane %v1476, 1
        %v1556 = vrot.slane %v1477, 1
        %v1557 = vsel %vm920, %v1555, %v1556
        %v1606 = vadd.f32 %v1394, %v1510
        %v1607 = vadd.f32 %v1395, %v1512
        %v1608 = vadd.f32 %v1396, %v1511
        %v1609 = vadd.f32 %v1397, %v1513
        %v1610 = vadd.f32 %v1398, %v1515
        %v1611 = vadd.f32 %v1399, %v1514
        %v1612 = vadd.f32 %v1400, %v1516
        %v1613 = vadd.f32 %v1401, %v1518
        %v1614 = vadd.f32 %v1402, %v1517
        %v1615 = vadd.f32 %v1403, %v1519
        %v1616 = vadd.f32 %v1404, %v1521
        %v1617 = vadd.f32 %v1405, %v1520
        %v1618 = vadd.f32 %v1406, %v1522
        %v1619 = vadd.f32 %v1407, %v1524
        %v1620 = vadd.f32 %v1408, %v1523
        %v1621 = vadd.f32 %v1409, %v1525
        %v1622 = vadd.f32 %v1410, %v1527
        %v1623 = vadd.f32 %v1411, %v1526
        %v1624 = vadd.f32 %v1412, %v1528
        %v1625 = vadd.f32 %v1413, %v1530
        %v1626 = vadd.f32 %v1414, %v1529
        %v1627 = vadd.f32 %v1415, %v1531
        %v1628 = vadd.f32 %v1416, %v1533
        %v1629 = vadd.f32 %v1417, %v1532
        %v1630 = vadd.f32 %v1418, %v1534
        %v1631 = vadd.f32 %v1419, %v1536
        %v1632 = vadd.f32 %v1420, %v1535
        %v1633 = vadd.f32 %v1421, %v1537
        %v1634 = vadd.f32 %v1422, %v1539
        %v1635 = vadd.f32 %v1423, %v1538
        %v1636 = vadd.f32 %v1424, %v1540
        %v1637 = vadd.f32 %v1425, %v1542
        %v1638 = vadd.f32 %v1426, %v1541
        %v1639 = vadd.f32 %v1427, %v1543
        %v1640 = vadd.f32 %v1428, %v1545
        %v1641 = vadd.f32 %v1429, %v1544
        %v1642 = vadd.f32 %v1430, %v1546
        %v1643 = vadd.f32 %v1431, %v1548
        %v1644 = vadd.f32 %v1432, %v1547
        %v1645 = vadd.f32 %v1433, %v1549
        %v1646 = vadd.f32 %v1434, %v1551
        %v1647 = vadd.f32 %v1435, %v1550
        %v1648 = vadd.f32 %v1436, %v1552
        %v1649 = vadd.f32 %v1437, %v1554
        %v1650 = vadd.f32 %v1438, %v1553
        %v1651 = vadd.f32 %v1439, %v1555
        %v1652 = vadd.f32 %v1440, %v1557
        %v1653 = vadd.f32 %v1441, %v1556
        %v1654 = vlaneseq
        %v1655 = vshrl.u32 %v1654, 7
        %v1656 = vsub.s32 5, %v1655
        %v1657 = vrot.slane %v798, %v1656
        %v1658 = vmul.f32 %v731, %v1657
        %v1659 = vmul.f32 %v732, %v1657
        %v1660 = vmul.f32 %v733, %v1657
        %v1661 = vmul.f32 %v735, %v1657
        %v1662 = vmul.f32 %v736, %v1657
        %v1663 = vmul.f32 %v737, %v1657
        %v1664 = vmul.f32 %v739, %v1657
        %v1665 = vmul.f32 %v740, %v1657
        %v1666 = vmul.f32 %v741, %v1657
        %v1667 = vmul.f32 %v743, %v1657
        %v1668 = vmul.f32 %v744, %v1657
        %v1669 = vmul.f32 %v745, %v1657
        %v1670 = vmul.f32 %v747, %v1657
        %v1671 = vmul.f32 %v748, %v1657
        %v1672 = vmul.f32 %v749, %v1657
        %v1673 = vmul.f32 %v751, %v1657
        %v1674 = vmul.f32 %v752, %v1657
        %v1675 = vmul.f32 %v753, %v1657
        %v1676 = vmul.f32 %v755, %v1657
        %v1677 = vmul.f32 %v756, %v1657
        %v1678 = vmul.f32 %v757, %v1657
        %v1679 = vmul.f32 %v759, %v1657
        %v1680 = vmul.f32 %v760, %v1657
        %v1681 = vmul.f32 %v761, %v1657
        %v1682 = vmul.f32 %v763, %v1657
        %v1683 = vmul.f32 %v764, %v1657
        %v1684 = vmul.f32 %v765, %v1657
        %v1685 = vmul.f32 %v767, %v1657
        %v1686 = vmul.f32 %v768, %v1657
        %v1687 = vmul.f32 %v769, %v1657
        %v1688 = vmul.f32 %v771, %v1657
        %v1689 = vmul.f32 %v772, %v1657
        %v1690 = vmul.f32 %v773, %v1657
        %v1691 = vmul.f32 %v775, %v1657
        %v1692 = vmul.f32 %v776, %v1657
        %v1693 = vmul.f32 %v777, %v1657
        %v1694 = vmul.f32 %v779, %v1657
        %v1695 = vmul.f32 %v780, %v1657
        %v1696 = vmul.f32 %v781, %v1657
        %v1697 = vmul.f32 %v783, %v1657
        %v1698 = vmul.f32 %v784, %v1657
        %v1699 = vmul.f32 %v785, %v1657
        %v1700 = vmul.f32 %v787, %v1657
        %v1701 = vmul.f32 %v788, %v1657
        %v1702 = vmul.f32 %v789, %v1657
        %v1703 = vmul.f32 %v791, %v1657
        %v1704 = vmul.f32 %v792, %v1657
        %v1705 = vmul.f32 %v793, %v1657
        %v1754 = vrot.slane %v1658, 2
        %v1755 = vrot.slane %v1659, 2
        %v1756 = vsel %vm1165, %v1754, %v1755
        %v1757 = vrot.slane %v1660, 2
        %v1758 = vsel %vm1165, %v1755, %v1757
        %v1759 = vrot.slane %v1661, 2
        %v1760 = vrot.slane %v1662, 2
        %v1761 = vsel %vm1165, %v1759, %v1760
        %v1762 = vrot.slane %v1663, 2
        %v1763 = vsel %vm1165, %v1760, %v1762
        %v1764 = vrot.slane %v1664, 2
        %v1765 = vrot.slane %v1665, 2
        %v1766 = vsel %vm1165, %v1764, %v1765
        %v1767 = vrot.slane %v1666, 2
        %v1768 = vsel %vm1165, %v1765, %v1767
        %v1769 = vrot.slane %v1667, 2
        %v1770 = vrot.slane %v1668, 2
        %v1771 = vsel %vm1165, %v1769, %v1770
        %v1772 = vrot.slane %v1669, 2
        %v1773 = vsel %vm1165, %v1770, %v1772
        %v1774 = vrot.slane %v1670, 2
        %v1775 = vrot.slane %v1671, 2
        %v1776 = vsel %vm1165, %v1774, %v1775
        %v1777 = vrot.slane %v1672, 2
        %v1778 = vsel %vm1165, %v1775, %v1777
        %v1779 = vrot.slane %v1673, 2
        %v1780 = vrot.slane %v1674, 2
        %v1781 = vsel %vm1165, %v1779, %v1780
        %v1782 = vrot.slane %v1675, 2
        %v1783 = vsel %vm1165, %v1780, %v1782
        %v1784 = vrot.slane %v1676, 2
        %v1785 = vrot.slane %v1677, 2
        %v1786 = vsel %vm1165, %v1784, %v1785
        %v1787 = vrot.slane %v1678, 2
        %v1788 = vsel %vm1165, %v1785, %v1787
        %v1789 = vrot.slane %v1679, 2
        %v1790 = vrot.slane %v1680, 2
        %v1791 = vsel %vm1165, %v1789, %v1790
        %v1792 = vrot.slane %v1681, 2
        %v1793 = vsel %vm1165, %v1790, %v1792
        %v1794 = vrot.slane %v1682, 2
        %v1795 = vrot.slane %v1683, 2
        %v1796 = vsel %vm1165, %v1794, %v1795
        %v1797 = vrot.slane %v1684, 2
        %v1798 = vsel %vm1165, %v1795, %v1797
        %v1799 = vrot.slane %v1685, 2
        %v1800 = vrot.slane %v1686, 2
        %v1801 = vsel %vm1165, %v1799, %v1800
        %v1802 = vrot.slane %v1687, 2
        %v1803 = vsel %vm1165, %v1800, %v1802
        %v1804 = vrot.slane %v1688, 2
        %v1805 = vrot.slane %v1689, 2
        %v1806 = vsel %vm1165, %v1804, %v1805
        %v1807 = vrot.slane %v1690, 2
        %v1808 = vsel %vm1165, %v1805, %v1807
        %v1809 = vrot.slane %v1691, 2
        %v1810 = vrot.slane %v1692, 2
        %v1811 = vsel %vm1165, %v1809, %v1810
        %v1812 = vrot.slane %v1693, 2
        %v1813 = vsel %vm1165, %v1810, %v1812
        %v1814 = vrot.slane %v1694, 2
        %v1815 = vrot.slane %v1695, 2
        %v1816 = vsel %vm1165, %v1814, %v1815
        %v1817 = vrot.slane %v1696, 2
        %v1818 = vsel %vm1165, %v1815, %v1817
        %v1819 = vrot.slane %v1697, 2
        %v1820 = vrot.slane %v1698, 2
        %v1821 = vsel %vm1165, %v1819, %v1820
        %v1822 = vrot.slane %v1699, 2
        %v1823 = vsel %vm1165, %v1820, %v1822
        %v1824 = vrot.slane %v1700, 2
        %v1825 = vrot.slane %v1701, 2
        %v1826 = vsel %vm1165, %v1824, %v1825
        %v1827 = vrot.slane %v1702, 2
        %v1828 = vsel %vm1165, %v1825, %v1827
        %v1829 = vrot.slane %v1703, 2
        %v1830 = vrot.slane %v1704, 2
        %v1831 = vsel %vm1165, %v1829, %v1830
        %v1832 = vrot.slane %v1705, 2
        %v1833 = vsel %vm1165, %v1830, %v1832
        %v1882 = vadd.f32 %v1606, %v1754
        %v1883 = vadd.f32 %v1607, %v1756
        %v1884 = vadd.f32 %v1608, %v1758
        %v1885 = vadd.f32 %v1609, %v1759
        %v1886 = vadd.f32 %v1610, %v1761
        %v1887 = vadd.f32 %v1611, %v1763
        %v1888 = vadd.f32 %v1612, %v1764
        %v1889 = vadd.f32 %v1613, %v1766
        %v1890 = vadd.f32 %v1614, %v1768
        %v1891 = vadd.f32 %v1615, %v1769
        %v1892 = vadd.f32 %v1616, %v1771
        %v1893 = vadd.f32 %v1617, %v1773
        %v1894 = vadd.f32 %v1618, %v1774
        %v1895 = vadd.f32 %v1619, %v1776
        %v1896 = vadd.f32 %v1620, %v1778
        %v1897 = vadd.f32 %v1621, %v1779
        %v1898 = vadd.f32 %v1622, %v1781
        %v1899 = vadd.f32 %v1623, %v1783
        %v1900 = vadd.f32 %v1624, %v1784
        %v1901 = vadd.f32 %v1625, %v1786
        %v1902 = vadd.f32 %v1626, %v1788
        %v1903 = vadd.f32 %v1627, %v1789
        %v1904 = vadd.f32 %v1628, %v1791
        %v1905 = vadd.f32 %v1629, %v1793
        %v1906 = vadd.f32 %v1630, %v1794
        %v1907 = vadd.f32 %v1631, %v1796
        %v1908 = vadd.f32 %v1632, %v1798
        %v1909 = vadd.f32 %v1633, %v1799
        %v1910 = vadd.f32 %v1634, %v1801
        %v1911 = vadd.f32 %v1635, %v1803
        %v1912 = vadd.f32 %v1636, %v1804
        %v1913 = vadd.f32 %v1637, %v1806
        %v1914 = vadd.f32 %v1638, %v1808
        %v1915 = vadd.f32 %v1639, %v1809
        %v1916 = vadd.f32 %v1640, %v1811
        %v1917 = vadd.f32 %v1641, %v1813
        %v1918 = vadd.f32 %v1642, %v1814
        %v1919 = vadd.f32 %v1643, %v1816
        %v1920 = vadd.f32 %v1644, %v1818
        %v1921 = vadd.f32 %v1645, %v1819
        %v1922 = vadd.f32 %v1646, %v1821
        %v1923 = vadd.f32 %v1647, %v1823
        %v1924 = vadd.f32 %v1648, %v1824
        %v1925 = vadd.f32 %v1649, %v1826
        %v1926 = vadd.f32 %v1650, %v1828
        %v1927 = vadd.f32 %v1651, %v1829
        %v1928 = vadd.f32 %v1652, %v1831
        %v1929 = vadd.f32 %v1653, %v1833
        %v1930 = vlaneseq
        %v1931 = vshrl.u32 %v1930, 7
        %v1932 = vsub.s32 6, %v1931
        %v1933 = vrot.slane %v798, %v1932
        %v1934 = vmul.f32 %v734, %v1933
        %v1935 = vmul.f32 %v735, %v1933
        %v1936 = vmul.f32 %v736, %v1933
        %v1937 = vmul.f32 %v738, %v1933
        %v1938 = vmul.f32 %v739, %v1933
        %v1939 = vmul.f32 %v740, %v1933
        %v1940 = vmul.f32 %v742, %v1933
        %v1941 = vmul.f32 %v743, %v1933
        %v1942 = vmul.f32 %v744, %v1933
        %v1943 = vmul.f32 %v746, %v1933
        %v1944 = vmul.f32 %v747, %v1933
        %v1945 = vmul.f32 %v748, %v1933
        %v1946 = vmul.f32 %v750, %v1933
        %v1947 = vmul.f32 %v751, %v1933
        %v1948 = vmul.f32 %v752, %v1933
        %v1949 = vmul.f32 %v754, %v1933
        %v1950 = vmul.f32 %v755, %v1933
        %v1951 = vmul.f32 %v756, %v1933
        %v1952 = vmul.f32 %v758, %v1933
        %v1953 = vmul.f32 %v759, %v1933
        %v1954 = vmul.f32 %v760, %v1933
        %v1955 = vmul.f32 %v762, %v1933
        %v1956 = vmul.f32 %v763, %v1933
        %v1957 = vmul.f32 %v764, %v1933
        %v1958 = vmul.f32 %v766, %v1933
        %v1959 = vmul.f32 %v767, %v1933
        %v1960 = vmul.f32 %v768, %v1933
        %v1961 = vmul.f32 %v770, %v1933
        %v1962 = vmul.f32 %v771, %v1933
        %v1963 = vmul.f32 %v772, %v1933
        %v1964 = vmul.f32 %v774, %v1933
        %v1965 = vmul.f32 %v775, %v1933
        %v1966 = vmul.f32 %v776, %v1933
        %v1967 = vmul.f32 %v778, %v1933
        %v1968 = vmul.f32 %v779, %v1933
        %v1969 = vmul.f32 %v780, %v1933
        %v1970 = vmul.f32 %v782, %v1933
        %v1971 = vmul.f32 %v783, %v1933
        %v1972 = vmul.f32 %v784, %v1933
        %v1973 = vmul.f32 %v786, %v1933
        %v1974 = vmul.f32 %v787, %v1933
        %v1975 = vmul.f32 %v788, %v1933
        %v1976 = vmul.f32 %v790, %v1933
        %v1977 = vmul.f32 %v791, %v1933
        %v1978 = vmul.f32 %v792, %v1933
        %v1979 = vmul.f32 %v794, %v1933
        %v1980 = vmul.f32 %v795, %v1933
        %v1981 = vmul.f32 %v796, %v1933
        %v1982 = vadd.f32 %v1882, %v1934
        %v1983 = vadd.f32 %v1883, %v1935
        %v1984 = vadd.f32 %v1884, %v1936
        %v1985 = vadd.f32 %v1885, %v1937
        %v1986 = vadd.f32 %v1886, %v1938
        %v1987 = vadd.f32 %v1887, %v1939
        %v1988 = vadd.f32 %v1888, %v1940
        %v1989 = vadd.f32 %v1889, %v1941
        %v1990 = vadd.f32 %v1890, %v1942
        %v1991 = vadd.f32 %v1891, %v1943
        %v1992 = vadd.f32 %v1892, %v1944
        %v1993 = vadd.f32 %v1893, %v1945
        %v1994 = vadd.f32 %v1894, %v1946
        %v1995 = vadd.f32 %v1895, %v1947
        %v1996 = vadd.f32 %v1896, %v1948
        %v1997 = vadd.f32 %v1897, %v1949
        %v1998 = vadd.f32 %v1898, %v1950
        %v1999 = vadd.f32 %v1899, %v1951
        %v2000 = vadd.f32 %v1900, %v1952
        %v2001 = vadd.f32 %v1901, %v1953
        %v2002 = vadd.f32 %v1902, %v1954
        %v2003 = vadd.f32 %v1903, %v1955
        %v2004 = vadd.f32 %v1904, %v1956
        %v2005 = vadd.f32 %v1905, %v1957
        %v2006 = vadd.f32 %v1906, %v1958
        %v2007 = vadd.f32 %v1907, %v1959
        %v2008 = vadd.f32 %v1908, %v1960
        %v2009 = vadd.f32 %v1909, %v1961
        %v2010 = vadd.f32 %v1910, %v1962
        %v2011 = vadd.f32 %v1911, %v1963
        %v2012 = vadd.f32 %v1912, %v1964
        %v2013 = vadd.f32 %v1913, %v1965
        %v2014 = vadd.f32 %v1914, %v1966
        %v2015 = vadd.f32 %v1915, %v1967
        %v2016 = vadd.f32 %v1916, %v1968
        %v2017 = vadd.f32 %v1917, %v1969
        %v2018 = vadd.f32 %v1918, %v1970
        %v2019 = vadd.f32 %v1919, %v1971
        %v2020 = vadd.f32 %v1920, %v1972
        %v2021 = vadd.f32 %v1921, %v1973
        %v2022 = vadd.f32 %v1922, %v1974
        %v2023 = vadd.f32 %v1923, %v1975
        %v2024 = vadd.f32 %v1924, %v1976
        %v2025 = vadd.f32 %v1925, %v1977
        %v2026 = vadd.f32 %v1926, %v1978
        %v2027 = vadd.f32 %v1927, %v1979
        %v2028 = vadd.f32 %v1928, %v1980
        %v2029 = vadd.f32 %v1929, %v1981
        %v2030 = vlaneseq
        %v2031 = vshrl.u32 %v2030, 7
        %v2032 = vsub.s32 7, %v2031
        %v2033 = vrot.slane %v798, %v2032
        %v2034 = vmul.f32 %v735, %v2033
        %v2035 = vmul.f32 %v736, %v2033
        %v2036 = vmul.f32 %v739, %v2033
        %v2037 = vmul.f32 %v740, %v2033
        %v2038 = vmul.f32 %v743, %v2033
        %v2039 = vmul.f32 %v744, %v2033
        %v2040 = vmul.f32 %v747, %v2033
        %v2041 = vmul.f32 %v748, %v2033
        %v2042 = vmul.f32 %v751, %v2033
        %v2043 = vmul.f32 %v752, %v2033
        %v2044 = vmul.f32 %v755, %v2033
        %v2045 = vmul.f32 %v756, %v2033
        %v2046 = vmul.f32 %v759, %v2033
        %v2047 = vmul.f32 %v760, %v2033
        %v2048 = vmul.f32 %v763, %v2033
        %v2049 = vmul.f32 %v764, %v2033
        %v2050 = vmul.f32 %v767, %v2033
        %v2051 = vmul.f32 %v768, %v2033
        %v2052 = vmul.f32 %v771, %v2033
        %v2053 = vmul.f32 %v772, %v2033
        %v2054 = vmul.f32 %v775, %v2033
        %v2055 = vmul.f32 %v776, %v2033
        %v2056 = vmul.f32 %v779, %v2033
        %v2057 = vmul.f32 %v780, %v2033
        %v2058 = vmul.f32 %v783, %v2033
        %v2059 = vmul.f32 %v784, %v2033
        %v2060 = vmul.f32 %v787, %v2033
        %v2061 = vmul.f32 %v788, %v2033
        %v2062 = vmul.f32 %v791, %v2033
        %v2063 = vmul.f32 %v792, %v2033
        %v2064 = vmul.f32 %v795, %v2033
        %v2065 = vmul.f32 %v796, %v2033
        %v2098 = vrot.slane %v2034, 1
        %v2099 = vrot.slane %v2035, 1
        %v2100 = vsel %vm920, %v2098, %v2099
        %v2101 = vrot.slane %v2036, 1
        %v2102 = vrot.slane %v2037, 1
        %v2103 = vsel %vm920, %v2101, %v2102
        %v2104 = vrot.slane %v2038, 1
        %v2105 = vrot.slane %v2039, 1
        %v2106 = vsel %vm920, %v2104, %v2105
        %v2107 = vrot.slane %v2040, 1
        %v2108 = vrot.slane %v2041, 1
        %v2109 = vsel %vm920, %v2107, %v2108
        %v2110 = vrot.slane %v2042, 1
        %v2111 = vrot.slane %v2043, 1
        %v2112 = vsel %vm920, %v2110, %v2111
        %v2113 = vrot.slane %v2044, 1
        %v2114 = vrot.slane %v2045, 1
        %v2115 = vsel %vm920, %v2113, %v2114
        %v2116 = vrot.slane %v2046, 1
        %v2117 = vrot.slane %v2047, 1
        %v2118 = vsel %vm920, %v2116, %v2117
        %v2119 = vrot.slane %v2048, 1
        %v2120 = vrot.slane %v2049, 1
        %v2121 = vsel %vm920, %v2119, %v2120
        %v2122 = vrot.slane %v2050, 1
        %v2123 = vrot.slane %v2051, 1
        %v2124 = vsel %vm920, %v2122, %v2123
        %v2125 = vrot.slane %v2052, 1
        %v2126 = vrot.slane %v2053, 1
        %v2127 = vsel %vm920, %v2125, %v2126
        %v2128 = vrot.slane %v2054, 1
        %v2129 = vrot.slane %v2055, 1
        %v2130 = vsel %vm920, %v2128, %v2129
        %v2131 = vrot.slane %v2056, 1
        %v2132 = vrot.slane %v2057, 1
        %v2133 = vsel %vm920, %v2131, %v2132
        %v2134 = vrot.slane %v2058, 1
        %v2135 = vrot.slane %v2059, 1
        %v2136 = vsel %vm920, %v2134, %v2135
        %v2137 = vrot.slane %v2060, 1
        %v2138 = vrot.slane %v2061, 1
        %v2139 = vsel %vm920, %v2137, %v2138
        %v2140 = vrot.slane %v2062, 1
        %v2141 = vrot.slane %v2063, 1
        %v2142 = vsel %vm920, %v2140, %v2141
        %v2143 = vrot.slane %v2064, 1
        %v2144 = vrot.slane %v2065, 1
        %v2145 = vsel %vm920, %v2143, %v2144
        %v2194 = vadd.f32 %v1982, %v2098
        %v2195 = vadd.f32 %v1983, %v2100
        %v2196 = vadd.f32 %v1984, %v2099
        %v2197 = vadd.f32 %v1985, %v2101
        %v2198 = vadd.f32 %v1986, %v2103
        %v2199 = vadd.f32 %v1987, %v2102
        %v2200 = vadd.f32 %v1988, %v2104
        %v2201 = vadd.f32 %v1989, %v2106
        %v2202 = vadd.f32 %v1990, %v2105
        %v2203 = vadd.f32 %v1991, %v2107
        %v2204 = vadd.f32 %v1992, %v2109
        %v2205 = vadd.f32 %v1993, %v2108
        %v2206 = vadd.f32 %v1994, %v2110
        %v2207 = vadd.f32 %v1995, %v2112
        %v2208 = vadd.f32 %v1996, %v2111
        %v2209 = vadd.f32 %v1997, %v2113
        %v2210 = vadd.f32 %v1998, %v2115
        %v2211 = vadd.f32 %v1999, %v2114
        %v2212 = vadd.f32 %v2000, %v2116
        %v2213 = vadd.f32 %v2001, %v2118
        %v2214 = vadd.f32 %v2002, %v2117
        %v2215 = vadd.f32 %v2003, %v2119
        %v2216 = vadd.f32 %v2004, %v2121
        %v2217 = vadd.f32 %v2005, %v2120
        %v2218 = vadd.f32 %v2006, %v2122
        %v2219 = vadd.f32 %v2007, %v2124
        %v2220 = vadd.f32 %v2008, %v2123
        %v2221 = vadd.f32 %v2009, %v2125
        %v2222 = vadd.f32 %v2010, %v2127
        %v2223 = vadd.f32 %v2011, %v2126
        %v2224 = vadd.f32 %v2012, %v2128
        %v2225 = vadd.f32 %v2013, %v2130
        %v2226 = vadd.f32 %v2014, %v2129
        %v2227 = vadd.f32 %v2015, %v2131
        %v2228 = vadd.f32 %v2016, %v2133
        %v2229 = vadd.f32 %v2017, %v2132
        %v2230 = vadd.f32 %v2018, %v2134
        %v2231 = vadd.f32 %v2019, %v2136
        %v2232 = vadd.f32 %v2020, %v2135
        %v2233 = vadd.f32 %v2021, %v2137
        %v2234 = vadd.f32 %v2022, %v2139
        %v2235 = vadd.f32 %v2023, %v2138
        %v2236 = vadd.f32 %v2024, %v2140
        %v2237 = vadd.f32 %v2025, %v2142
        %v2238 = vadd.f32 %v2026, %v2141
        %v2239 = vadd.f32 %v2027, %v2143
        %v2240 = vadd.f32 %v2028, %v2145
        %v2241 = vadd.f32 %v2029, %v2144
        %v2242 = vlaneseq
        %v2243 = vshrl.u32 %v2242, 7
        %v2244 = vsub.s32 0, %v2243
        %v2245 = vrot.slane %v799, %v2244
        %v2246 = vmul.f32 %v735, %v2245
        %v2247 = vmul.f32 %v736, %v2245
        %v2248 = vmul.f32 %v737, %v2245
        %v2249 = vmul.f32 %v739, %v2245
        %v2250 = vmul.f32 %v740, %v2245
        %v2251 = vmul.f32 %v741, %v2245
        %v2252 = vmul.f32 %v743, %v2245
        %v2253 = vmul.f32 %v744, %v2245
        %v2254 = vmul.f32 %v745, %v2245
        %v2255 = vmul.f32 %v747, %v2245
        %v2256 = vmul.f32 %v748, %v2245
        %v2257 = vmul.f32 %v749, %v2245
        %v2258 = vmul.f32 %v751, %v2245
        %v2259 = vmul.f32 %v752, %v2245
        %v2260 = vmul.f32 %v753, %v2245
        %v2261 = vmul.f32 %v755, %v2245
        %v2262 = vmul.f32 %v756, %v2245
        %v2263 = vmul.f32 %v757, %v2245
        %v2264 = vmul.f32 %v759, %v2245
        %v2265 = vmul.f32 %v760, %v2245
        %v2266 = vmul.f32 %v761, %v2245
        %v2267 = vmul.f32 %v763, %v2245
        %v2268 = vmul.f32 %v764, %v2245
        %v2269 = vmul.f32 %v765, %v2245
        %v2270 = vmul.f32 %v767, %v2245
        %v2271 = vmul.f32 %v768, %v2245
        %v2272 = vmul.f32 %v769, %v2245
        %v2273 = vmul.f32 %v771, %v2245
        %v2274 = vmul.f32 %v772, %v2245
        %v2275 = vmul.f32 %v773, %v2245
        %v2276 = vmul.f32 %v775, %v2245
        %v2277 = vmul.f32 %v776, %v2245
        %v2278 = vmul.f32 %v777, %v2245
        %v2279 = vmul.f32 %v779, %v2245
        %v2280 = vmul.f32 %v780, %v2245
        %v2281 = vmul.f32 %v781, %v2245
        %v2282 = vmul.f32 %v783, %v2245
        %v2283 = vmul.f32 %v784, %v2245
        %v2284 = vmul.f32 %v785, %v2245
        %v2285 = vmul.f32 %v787, %v2245
        %v2286 = vmul.f32 %v788, %v2245
        %v2287 = vmul.f32 %v789, %v2245
        %v2288 = vmul.f32 %v791, %v2245
        %v2289 = vmul.f32 %v792, %v2245
        %v2290 = vmul.f32 %v793, %v2245
        %v2291 = vmul.f32 %v795, %v2245
        %v2292 = vmul.f32 %v796, %v2245
        %v2293 = vmul.f32 %v797, %v2245
        %v2342 = vrot.slane %v2246, 2
        %v2343 = vrot.slane %v2247, 2
        %v2344 = vsel %vm1165, %v2342, %v2343
        %v2345 = vrot.slane %v2248, 2
        %v2346 = vsel %vm1165, %v2343, %v2345
        %v2347 = vrot.slane %v2249, 2
        %v2348 = vrot.slane %v2250, 2
        %v2349 = vsel %vm1165, %v2347, %v2348
        %v2350 = vrot.slane %v2251, 2
        %v2351 = vsel %vm1165, %v2348, %v2350
        %v2352 = vrot.slane %v2252, 2
        %v2353 = vrot.slane %v2253, 2
        %v2354 = vsel %vm1165, %v2352, %v2353
        %v2355 = vrot.slane %v2254, 2
        %v2356 = vsel %vm1165, %v2353, %v2355
        %v2357 = vrot.slane %v2255, 2
        %v2358 = vrot.slane %v2256, 2
        %v2359 = vsel %vm1165, %v2357, %v2358
        %v2360 = vrot.slane %v2257, 2
        %v2361 = vsel %vm1165, %v2358, %v2360
        %v2362 = vrot.slane %v2258, 2
        %v2363 = vrot.slane %v2259, 2
        %v2364 = vsel %vm1165, %v2362, %v2363
        %v2365 = vrot.slane %v2260, 2
        %v2366 = vsel %vm1165, %v2363, %v2365
        %v2367 = vrot.slane %v2261, 2
        %v2368 = vrot.slane %v2262, 2
        %v2369 = vsel %vm1165, %v2367, %v2368
        %v2370 = vrot.slane %v2263, 2
        %v2371 = vsel %vm1165, %v2368, %v2370
        %v2372 = vrot.slane %v2264, 2
        %v2373 = vrot.slane %v2265, 2
        %v2374 = vsel %vm1165, %v2372, %v2373
        %v2375 = vrot.slane %v2266, 2
        %v2376 = vsel %vm1165, %v2373, %v2375
        %v2377 = vrot.slane %v2267, 2
        %v2378 = vrot.slane %v2268, 2
        %v2379 = vsel %vm1165, %v2377, %v2378
        %v2380 = vrot.slane %v2269, 2
        %v2381 = vsel %vm1165, %v2378, %v2380
        %v2382 = vrot.slane %v2270, 2
        %v2383 = vrot.slane %v2271, 2
        %v2384 = vsel %vm1165, %v2382, %v2383
        %v2385 = vrot.slane %v2272, 2
        %v2386 = vsel %vm1165, %v2383, %v2385
        %v2387 = vrot.slane %v2273, 2
        %v2388 = vrot.slane %v2274, 2
        %v2389 = vsel %vm1165, %v2387, %v2388
        %v2390 = vrot.slane %v2275, 2
        %v2391 = vsel %vm1165, %v2388, %v2390
        %v2392 = vrot.slane %v2276, 2
        %v2393 = vrot.slane %v2277, 2
        %v2394 = vsel %vm1165, %v2392, %v2393
        %v2395 = vrot.slane %v2278, 2
        %v2396 = vsel %vm1165, %v2393, %v2395
        %v2397 = vrot.slane %v2279, 2
        %v2398 = vrot.slane %v2280, 2
        %v2399 = vsel %vm1165, %v2397, %v2398
        %v2400 = vrot.slane %v2281, 2
        %v2401 = vsel %vm1165, %v2398, %v2400
        %v2402 = vrot.slane %v2282, 2
        %v2403 = vrot.slane %v2283, 2
        %v2404 = vsel %vm1165, %v2402, %v2403
        %v2405 = vrot.slane %v2284, 2
        %v2406 = vsel %vm1165, %v2403, %v2405
        %v2407 = vrot.slane %v2285, 2
        %v2408 = vrot.slane %v2286, 2
        %v2409 = vsel %vm1165, %v2407, %v2408
        %v2410 = vrot.slane %v2287, 2
        %v2411 = vsel %vm1165, %v2408, %v2410
        %v2412 = vrot.slane %v2288, 2
        %v2413 = vrot.slane %v2289, 2
        %v2414 = vsel %vm1165, %v2412, %v2413
        %v2415 = vrot.slane %v2290, 2
        %v2416 = vsel %vm1165, %v2413, %v2415
        %v2417 = vrot.slane %v2291, 2
        %v2418 = vrot.slane %v2292, 2
        %v2419 = vsel %vm1165, %v2417, %v2418
        %v2420 = vrot.slane %v2293, 2
        %v2421 = vsel %vm1165, %v2418, %v2420
        %v2470 = vadd.f32 %v2194, %v2342
        %v2471 = vadd.f32 %v2195, %v2344
        %v2472 = vadd.f32 %v2196, %v2346
        %v2473 = vadd.f32 %v2197, %v2347
        %v2474 = vadd.f32 %v2198, %v2349
        %v2475 = vadd.f32 %v2199, %v2351
        %v2476 = vadd.f32 %v2200, %v2352
        %v2477 = vadd.f32 %v2201, %v2354
        %v2478 = vadd.f32 %v2202, %v2356
        %v2479 = vadd.f32 %v2203, %v2357
        %v2480 = vadd.f32 %v2204, %v2359
        %v2481 = vadd.f32 %v2205, %v2361
        %v2482 = vadd.f32 %v2206, %v2362
        %v2483 = vadd.f32 %v2207, %v2364
        %v2484 = vadd.f32 %v2208, %v2366
        %v2485 = vadd.f32 %v2209, %v2367
        %v2486 = vadd.f32 %v2210, %v2369
        %v2487 = vadd.f32 %v2211, %v2371
        %v2488 = vadd.f32 %v2212, %v2372
        %v2489 = vadd.f32 %v2213, %v2374
        %v2490 = vadd.f32 %v2214, %v2376
        %v2491 = vadd.f32 %v2215, %v2377
        %v2492 = vadd.f32 %v2216, %v2379
        %v2493 = vadd.f32 %v2217, %v2381
        %v2494 = vadd.f32 %v2218, %v2382
        %v2495 = vadd.f32 %v2219, %v2384
        %v2496 = vadd.f32 %v2220, %v2386
        %v2497 = vadd.f32 %v2221, %v2387
        %v2498 = vadd.f32 %v2222, %v2389
        %v2499 = vadd.f32 %v2223, %v2391
        %v2500 = vadd.f32 %v2224, %v2392
        %v2501 = vadd.f32 %v2225, %v2394
        %v2502 = vadd.f32 %v2226, %v2396
        %v2503 = vadd.f32 %v2227, %v2397
        %v2504 = vadd.f32 %v2228, %v2399
        %v2505 = vadd.f32 %v2229, %v2401
        %v2506 = vadd.f32 %v2230, %v2402
        %v2507 = vadd.f32 %v2231, %v2404
        %v2508 = vadd.f32 %v2232, %v2406
        %v2509 = vadd.f32 %v2233, %v2407
        %v2510 = vadd.f32 %v2234, %v2409
        %v2511 = vadd.f32 %v2235, %v2411
        %v2512 = vadd.f32 %v2236, %v2412
        %v2513 = vadd.f32 %v2237, %v2414
        %v2514 = vadd.f32 %v2238, %v2416
        %v2515 = vadd.f32 %v2239, %v2417
        %v2516 = vadd.f32 %v2240, %v2419
        %v2517 = vadd.f32 %v2241, %v2421
        %vm2566 = vcmask 1040384
        %v2567 = vrot.slane %v2470, 7
        %v2568 = vrot.slane %v2471, 7
        %v2569 = vsel %vm2566, %v2567, %v2568
        %v2570 = vrot.slane %v2472, 7
        %v2571 = vsel %vm2566, %v2568, %v2570
        %v2572 = vrot.slane %v2473, 7
        %v2573 = vrot.slane %v2474, 7
        %v2574 = vsel %vm2566, %v2572, %v2573
        %v2575 = vrot.slane %v2475, 7
        %v2576 = vsel %vm2566, %v2573, %v2575
        %v2577 = vrot.slane %v2476, 7
        %v2578 = vrot.slane %v2477, 7
        %v2579 = vsel %vm2566, %v2577, %v2578
        %v2580 = vrot.slane %v2478, 7
        %v2581 = vsel %vm2566, %v2578, %v2580
        %v2582 = vrot.slane %v2479, 7
        %v2583 = vrot.slane %v2480, 7
        %v2584 = vsel %vm2566, %v2582, %v2583
        %v2585 = vrot.slane %v2481, 7
        %v2586 = vsel %vm2566, %v2583, %v2585
        %v2587 = vrot.slane %v2482, 7
        %v2588 = vrot.slane %v2483, 7
        %v2589 = vsel %vm2566, %v2587, %v2588
        %v2590 = vrot.slane %v2484, 7
        %v2591 = vsel %vm2566, %v2588, %v2590
        %v2592 = vrot.slane %v2485, 7
        %v2593 = vrot.slane %v2486, 7
        %v2594 = vsel %vm2566, %v2592, %v2593
        %v2595 = vrot.slane %v2487, 7
        %v2596 = vsel %vm2566, %v2593, %v2595
        %v2597 = vrot.slane %v2488, 7
        %v2598 = vrot.slane %v2489, 7
        %v2599 = vsel %vm2566, %v2597, %v2598
        %v2600 = vrot.slane %v2490, 7
        %v2601 = vsel %vm2566, %v2598, %v2600
        %v2602 = vrot.slane %v2491, 7
        %v2603 = vrot.slane %v2492, 7
        %v2604 = vsel %vm2566, %v2602, %v2603
        %v2605 = vrot.slane %v2493, 7
        %v2606 = vsel %vm2566, %v2603, %v2605
        %v2607 = vrot.slane %v2494, 7
        %v2608 = vrot.slane %v2495, 7
        %v2609 = vsel %vm2566, %v2607, %v2608
        %v2610 = vrot.slane %v2496, 7
        %v2611 = vsel %vm2566, %v2608, %v2610
        %v2612 = vrot.slane %v2497, 7
        %v2613 = vrot.slane %v2498, 7
        %v2614 = vsel %vm2566, %v2612, %v2613
        %v2615 = vrot.slane %v2499, 7
        %v2616 = vsel %vm2566, %v2613, %v2615
        %v2617 = vrot.slane %v2500, 7
        %v2618 = vrot.slane %v2501, 7
        %v2619 = vsel %vm2566, %v2617, %v2618
        %v2620 = vrot.slane %v2502, 7
        %v2621 = vsel %vm2566, %v2618, %v2620
        %v2622 = vrot.slane %v2503, 7
        %v2623 = vrot.slane %v2504, 7
        %v2624 = vsel %vm2566, %v2622, %v2623
        %v2625 = vrot.slane %v2505, 7
        %v2626 = vsel %vm2566, %v2623, %v2625
        %v2627 = vrot.slane %v2506, 7
        %v2628 = vrot.slane %v2507, 7
        %v2629 = vsel %vm2566, %v2627, %v2628
        %v2630 = vrot.slane %v2508, 7
        %v2631 = vsel %vm2566, %v2628, %v2630
        %v2632 = vrot.slane %v2509, 7
        %v2633 = vrot.slane %v2510, 7
        %v2634 = vsel %vm2566, %v2632, %v2633
        %v2635 = vrot.slane %v2511, 7
        %v2636 = vsel %vm2566, %v2633, %v2635
        %v2637 = vrot.slane %v2512, 7
        %v2638 = vrot.slane %v2513, 7
        %v2639 = vsel %vm2566, %v2637, %v2638
        %v2640 = vrot.slane %v2514, 7
        %v2641 = vsel %vm2566, %v2638, %v2640
        %v2642 = vrot.slane %v2515, 7
        %v2643 = vrot.slane %v2516, 7
        %v2644 = vsel %vm2566, %v2642, %v2643
        %v2645 = vrot.slane %v2517, 7
        %v2646 = vsel %vm2566, %v2643, %v2645
        %v2679 = vld [vmem:[%s5] sm:$0x1]
        %v2681 = vlaneseq
        %v2682 = vshrl.u32 %v2681, 7
        %v2683 = vsub.s32 0, %v2682
        %v2684 = vrot.slane %v2679, %v2683
        %v2686 = vmul.f32 %v2569, %v2684
        %v2687 = vmul.f32 %v2571, %v2684
        %v2688 = vmul.f32 %v2574, %v2684
        %v2689 = vmul.f32 %v2576, %v2684
        %v2690 = vmul.f32 %v2579, %v2684
        %v2691 = vmul.f32 %v2581, %v2684
        %v2692 = vmul.f32 %v2584, %v2684
        %v2693 = vmul.f32 %v2586, %v2684
        %v2694 = vmul.f32 %v2589, %v2684
        %v2695 = vmul.f32 %v2591, %v2684
        %v2696 = vmul.f32 %v2594, %v2684
        %v2697 = vmul.f32 %v2596, %v2684
        %v2698 = vmul.f32 %v2599, %v2684
        %v2699 = vmul.f32 %v2601, %v2684
        %v2700 = vmul.f32 %v2604, %v2684
        %v2701 = vmul.f32 %v2606, %v2684
        %v2702 = vmul.f32 %v2609, %v2684
        %v2703 = vmul.f32 %v2611, %v2684
        %v2704 = vmul.f32 %v2614, %v2684
        %v2705 = vmul.f32 %v2616, %v2684
        %v2706 = vmul.f32 %v2619, %v2684
        %v2707 = vmul.f32 %v2621, %v2684
        %v2708 = vmul.f32 %v2624, %v2684
        %v2709 = vmul.f32 %v2626, %v2684
        %v2710 = vmul.f32 %v2629, %v2684
        %v2711 = vmul.f32 %v2631, %v2684
        %v2712 = vmul.f32 %v2634, %v2684
        %v2713 = vmul.f32 %v2636, %v2684
        %v2714 = vmul.f32 %v2639, %v2684
        %v2715 = vmul.f32 %v2641, %v2684
        %v2716 = vmul.f32 %v2644, %v2684
        %v2717 = vmul.f32 %v2646, %v2684
        %v2718 = vld [vmem:[%s6] sm:$0x1]
        %v2720 = vlaneseq
        %v2721 = vshrl.u32 %v2720, 7
        %v2722 = vsub.s32 0, %v2721
        %v2723 = vrot.slane %v2718, %v2722
        %v2725 = vadd.f32 %v2686, %v2723
        %v2726 = vadd.f32 %v2687, %v2723
        %v2727 = vadd.f32 %v2688, %v2723
        %v2728 = vadd.f32 %v2689, %v2723
        %v2729 = vadd.f32 %v2690, %v2723
        %v2730 = vadd.f32 %v2691, %v2723
        %v2731 = vadd.f32 %v2692, %v2723
        %v2732 = vadd.f32 %v2693, %v2723
        %v2733 = vadd.f32 %v2694, %v2723
        %v2734 = vadd.f32 %v2695, %v2723
        %v2735 = vadd.f32 %v2696, %v2723
        %v2736 = vadd.f32 %v2697, %v2723
        %v2737 = vadd.f32 %v2698, %v2723
        %v2738 = vadd.f32 %v2699, %v2723
        %v2739 = vadd.f32 %v2700, %v2723
        %v2740 = vadd.f32 %v2701, %v2723
        %v2741 = vadd.f32 %v2702, %v2723
        %v2742 = vadd.f32 %v2703, %v2723
        %v2743 = vadd.f32 %v2704, %v2723
        %v2744 = vadd.f32 %v2705, %v2723
        %v2745 = vadd.f32 %v2706, %v2723
        %v2746 = vadd.f32 %v2707, %v2723
        %v2747 = vadd.f32 %v2708, %v2723
        %v2748 = vadd.f32 %v2709, %v2723
        %v2749 = vadd.f32 %v2710, %v2723
        %v2750 = vadd.f32 %v2711, %v2723
        %v2751 = vadd.f32 %v2712, %v2723
        %v2752 = vadd.f32 %v2713, %v2723
        %v2753 = vadd.f32 %v2714, %v2723
        %v2754 = vadd.f32 %v2715, %v2723
        %v2755 = vadd.f32 %v2716, %v2723
        %v2756 = vadd.f32 %v2717, %v2723
        %vm2757 = vcmp.ge.f32.partialorder %v2725, 0.0
        %vm2758 = vcmp.ge.f32.partialorder %v2726, 0.0
        %vm2759 = vcmp.ge.f32.partialorder %v2727, 0.0
        %vm2760 = vcmp.ge.f32.partialorder %v2728, 0.0
        %vm2761 = vcmp.ge.f32.partialorder %v2729, 0.0
        %vm2762 = vcmp.ge.f32.partialorder %v2730, 0.0
        %vm2763 = vcmp.ge.f32.partialorder %v2731, 0.0
        %vm2764 = vcmp.ge.f32.partialorder %v2732, 0.0
        %vm2765 = vcmp.ge.f32.partialorder %v2733, 0.0
        %vm2766 = vcmp.ge.f32.partialorder %v2734, 0.0
        %vm2767 = vcmp.ge.f32.partialorder %v2735, 0.0
        %vm2768 = vcmp.ge.f32.partialorder %v2736, 0.0
        %vm2769 = vcmp.ge.f32.partialorder %v2737, 0.0
        %vm2770 = vcmp.ge.f32.partialorder %v2738, 0.0
        %vm2771 = vcmp.ge.f32.partialorder %v2739, 0.0
        %vm2772 = vcmp.ge.f32.partialorder %v2740, 0.0
        %vm2773 = vcmp.ge.f32.partialorder %v2741, 0.0
        %vm2774 = vcmp.ge.f32.partialorder %v2742, 0.0
        %vm2775 = vcmp.ge.f32.partialorder %v2743, 0.0
        %vm2776 = vcmp.ge.f32.partialorder %v2744, 0.0
        %vm2777 = vcmp.ge.f32.partialorder %v2745, 0.0
        %vm2778 = vcmp.ge.f32.partialorder %v2746, 0.0
        %vm2779 = vcmp.ge.f32.partialorder %v2747, 0.0
        %vm2780 = vcmp.ge.f32.partialorder %v2748, 0.0
        %vm2781 = vcmp.ge.f32.partialorder %v2749, 0.0
        %vm2782 = vcmp.ge.f32.partialorder %v2750, 0.0
        %vm2783 = vcmp.ge.f32.partialorder %v2751, 0.0
        %vm2784 = vcmp.ge.f32.partialorder %v2752, 0.0
        %vm2785 = vcmp.ge.f32.partialorder %v2753, 0.0
        %vm2786 = vcmp.ge.f32.partialorder %v2754, 0.0
        %vm2787 = vcmp.ge.f32.partialorder %v2755, 0.0
        %vm2788 = vcmp.ge.f32.partialorder %v2756, 0.0
        %v2789 = vmul.f32 %v2725, 0.1
        %v2790 = vmul.f32 %v2726, 0.1
        %v2791 = vmul.f32 %v2727, 0.1
        %v2792 = vmul.f32 %v2728, 0.1
        %v2793 = vmul.f32 %v2729, 0.1
        %v2794 = vmul.f32 %v2730, 0.1
        %v2795 = vmul.f32 %v2731, 0.1
        %v2796 = vmul.f32 %v2732, 0.1
        %v2797 = vmul.f32 %v2733, 0.1
        %v2798 = vmul.f32 %v2734, 0.1
        %v2799 = vmul.f32 %v2735, 0.1
        %v2800 = vmul.f32 %v2736, 0.1
        %v2801 = vmul.f32 %v2737, 0.1
        %v2802 = vmul.f32 %v2738, 0.1
        %v2803 = vmul.f32 %v2739, 0.1
        %v2804 = vmul.f32 %v2740, 0.1
        %v2805 = vmul.f32 %v2741, 0.1
        %v2806 = vmul.f32 %v2742, 0.1
        %v2807 = vmul.f32 %v2743, 0.1
        %v2808 = vmul.f32 %v2744, 0.1
        %v2809 = vmul.f32 %v2745, 0.1
        %v2810 = vmul.f32 %v2746, 0.1
        %v2811 = vmul.f32 %v2747, 0.1
        %v2812 = vmul.f32 %v2748, 0.1
        %v2813 = vmul.f32 %v2749, 0.1
        %v2814 = vmul.f32 %v2750, 0.1
        %v2815 = vmul.f32 %v2751, 0.1
        %v2816 = vmul.f32 %v2752, 0.1
        %v2817 = vmul.f32 %v2753, 0.1
        %v2818 = vmul.f32 %v2754, 0.1
        %v2819 = vmul.f32 %v2755, 0.1
        %v2820 = vmul.f32 %v2756, 0.1
        %v2821 = vsel %vm2757, %v2725, %v2789
        %v2822 = vsel %vm2758, %v2726, %v2790
        %v2823 = vsel %vm2759, %v2727, %v2791
        %v2824 = vsel %vm2760, %v2728, %v2792
        %v2825 = vsel %vm2761, %v2729, %v2793
        %v2826 = vsel %vm2762, %v2730, %v2794
        %v2827 = vsel %vm2763, %v2731, %v2795
        %v2828 = vsel %vm2764, %v2732, %v2796
        %v2829 = vsel %vm2765, %v2733, %v2797
        %v2830 = vsel %vm2766, %v2734, %v2798
        %v2831 = vsel %vm2767, %v2735, %v2799
        %v2832 = vsel %vm2768, %v2736, %v2800
        %v2833 = vsel %vm2769, %v2737, %v2801
        %v2834 = vsel %vm2770, %v2738, %v2802
        %v2835 = vsel %vm2771, %v2739, %v2803
        %v2836 = vsel %vm2772, %v2740, %v2804
        %v2837 = vsel %vm2773, %v2741, %v2805
        %v2838 = vsel %vm2774, %v2742, %v2806
        %v2839 = vsel %vm2775, %v2743, %v2807
        %v2840 = vsel %vm2776, %v2744, %v2808
        %v2841 = vsel %vm2777, %v2745, %v2809
        %v2842 = vsel %vm2778, %v2746, %v2810
        %v2843 = vsel %vm2779, %v2747, %v2811
        %v2844 = vsel %vm2780, %v2748, %v2812
        %v2845 = vsel %vm2781, %v2749, %v2813
        %v2846 = vsel %vm2782, %v2750, %v2814
        %v2847 = vsel %vm2783, %v2751, %v2815
        %v2848 = vsel %vm2784, %v2752, %v2816
        %v2849 = vsel %vm2785, %v2753, %v2817
        %v2850 = vsel %vm2786, %v2754, %v2818
        %v2851 = vsel %vm2787, %v2755, %v2819
        %v2852 = vsel %vm2788, %v2756, %v2820
        %v2853 = vld [vmem:[%s7] sm:$0xff]
        %v2854 = vld [vmem:[%s7 + $0x8] sm:$0xff]
        %v2856 = vsel %vm620, %v2853, 0
        %v2859 = vsel %vm620, %v2854, 0
        %v2862 = vsel %vm620, %v2821, 0
        %v2865 = vsel %vm620, %v2822, 0
        %v2868 = vsel %vm620, %v2823, 0
        %v2871 = vsel %vm620, %v2824, 0
        %v2874 = vsel %vm620, %v2825, 0
        %v2877 = vsel %vm620, %v2826, 0
        %v2880 = vsel %vm620, %v2827, 0
        %v2883 = vsel %vm620, %v2828, 0
        %v2886 = vsel %vm620, %v2829, 0
        %v2889 = vsel %vm620, %v2830, 0
        %v2892 = vsel %vm620, %v2831, 0
        %v2895 = vsel %vm620, %v2832, 0
        %v2898 = vsel %vm620, %v2833, 0
        %v2901 = vsel %vm620, %v2834, 0
        %v2904 = vsel %vm620, %v2835, 0
        %v2907 = vsel %vm620, %v2836, 0
        %v2910 = vsel %vm620, %v2837, 0
        %v2913 = vsel %vm620, %v2838, 0
        %v2916 = vsel %vm620, %v2839, 0
        %v2919 = vsel %vm620, %v2840, 0
        %v2922 = vsel %vm620, %v2841, 0
        %v2925 = vsel %vm620, %v2842, 0
        %v2928 = vsel %vm620, %v2843, 0
        %v2931 = vsel %vm620, %v2844, 0
        %v2934 = vsel %vm620, %v2845, 0
        %v2937 = vsel %vm620, %v2846, 0
        %v2940 = vsel %vm620, %v2847, 0
        %v2943 = vsel %vm620, %v2848, 0
        %v2946 = vsel %vm620, %v2849, 0
        %v2949 = vsel %vm620, %v2850, 0
        %v2952 = vsel %vm620, %v2851, 0
        %v2955 = vsel %vm620, %v2852, 0
        %2957 = vmatprep.subr.mxu0 0.0
        %2958 = vmatpush1.xpose.msra.mxu0 %v2862
        %2959 = vmatprep.subr.mxu0 0.0
        %2960 = vmatpush1.xpose.msra.mxu0 %v2865
        %2961 = vmatprep.subr.mxu0 0.0
        %2962 = vmatpush1.xpose.msra.mxu0 %v2868
        %2963 = vmatprep.subr.mxu0 0.0
        %2964 = vmatpush1.xpose.msra.mxu0 %v2871
        %2965 = vmatprep.subr.mxu0 0.0
        %2966 = vmatpush1.xpose.msra.mxu0 %v2874
        %2967 = vmatprep.subr.mxu0 0.0
        %2968 = vmatpush1.xpose.msra.mxu0 %v2877
        %2969 = vmatprep.subr.mxu0 0.0
        %2970 = vmatpush1.xpose.msra.mxu0 %v2880
        %2971 = vmatprep.subr.mxu0 0.0
        %2972 = vmatpush1.xpose.msra.mxu0 %v2883
        %2973 = vmatprep.subr.mxu0 0.0
        %2974 = vmatpush1.xpose.msra.mxu0 %v2886
        %2975 = vmatprep.subr.mxu0 0.0
        %2976 = vmatpush1.xpose.msra.mxu0 %v2889
        %2977 = vmatprep.subr.mxu0 0.0
        %2978 = vmatpush1.xpose.msra.mxu0 %v2892
        %2979 = vmatprep.subr.mxu0 0.0
        %2980 = vmatpush1.xpose.msra.mxu0 %v2895
        %2981 = vmatprep.subr.mxu0 0.0
        %2982 = vmatpush1.xpose.msra.mxu0 %v2898
        %2983 = vmatprep.subr.mxu0 0.0
        %2984 = vmatpush1.xpose.msra.mxu0 %v2901
        %2985 = vmatprep.subr.mxu0 0.0
        %2986 = vmatpush1.xpose.msra.mxu0 %v2904
        %2987 = vmatprep.subr.mxu0 0.0
        %2988 = vmatpush1.xpose.msra.mxu0 %v2907
        %2989 = vmatprep.subr.mxu0 0.0
        %2990 = vmatpush1.xpose.msra.mxu0 %v2910
        %2991 = vmatprep.subr.mxu0 0.0
        %2992 = vmatpush1.xpose.msra.mxu0 %v2913
        %2993 = vmatprep.subr.mxu0 0.0
        %2994 = vmatpush1.xpose.msra.mxu0 %v2916
        %2995 = vmatprep.subr.mxu0 0.0
        %2996 = vmatpush1.xpose.msra.mxu0 %v2919
        %2997 = vmatprep.subr.mxu0 0.0
        %2998 = vmatpush1.xpose.msra.mxu0 %v2922
        %2999 = vmatprep.subr.mxu0 0.0
        %3000 = vmatpush1.xpose.msra.mxu0 %v2925
        %3001 = vmatprep.subr.mxu0 0.0
        %3002 = vmatpush1.xpose.msra.mxu0 %v2928
        %3003 = vmatprep.subr.mxu0 0.0
        %3004 = vmatpush1.xpose.msra.mxu0 %v2931
        %3005 = vmatprep.subr.mxu0 0.0
        %3006 = vmatpush1.xpose.msra.mxu0 %v2934
        %3007 = vmatprep.subr.mxu0 0.0
        %3008 = vmatpush1.xpose.msra.mxu0 %v2937
        %3009 = vmatprep.subr.mxu0 0.0
        %3010 = vmatpush1.xpose.msra.mxu0 %v2940
        %3011 = vmatprep.subr.mxu0 0.0
        %3012 = vmatpush1.xpose.msra.mxu0 %v2943
        %3013 = vmatprep.subr.mxu0 0.0
        %3014 = vmatpush1.xpose.msra.mxu0 %v2946
        %3015 = vmatprep.subr.mxu0 0.0
        %3016 = vmatpush1.xpose.msra.mxu0 %v2949
        %3017 = vmatprep.subr.mxu0 0.0
        %3018 = vmatpush1.xpose.msra.mxu0 %v2952
        %3019 = vmatprep.subr.mxu0 0.0
        %3020 = vmatpush1.xpose.msra.mxu0 %v2955
        %3021 = vmatprep.mubr.f32.mxu0 0.0
        %3022 = vmatmul.mubr.f32.gmra.mrb[0].mxu0 %v2856
        %v3023 = vpop.f32.mrb[0].mxu0
        %v3024 = vadd.f32 0.0, %v3023
        %v3025 = vpop.f32.mrb[0].mxu0
        %v3026 = vadd.f32 0.0, %v3025
        %3027 = vmatprep.mubr.f32.mxu0 0.0
        %3028 = vmatmul.mubr.f32.gmra.mrb[0].mxu0 %v2859
        %v3029 = vpop.f32.mrb[0].mxu0
        %v3030 = vadd.f32 0.0, %v3029
        %v3031 = vpop.f32.mrb[0].mxu0
        %v3032 = vadd.f32 0.0, %v3031
        %3033 = vdwg.mxu0
        %v3034 = vld [vmem:[%s8] sm:$0xff]
        %v3035 = vld [vmem:[%s8 + $0x8] sm:$0xff]
        %3037 = vset.pattern.permute.xlu0 0
        %3038 = vperm.xlu0 %3037, %v3034
        %v3039 = vpop.permute.xlu0 %3038
        %3042 = vset.pattern.permute.xlu0 0
        %3043 = vperm.xlu0 %3042, %v3035
        %v3044 = vpop.permute.xlu0 %3043
        %v3046 = vmul.f32 %v3024, %v3039
        %v3047 = vmul.f32 %v3026, %v3039
        %v3048 = vmul.f32 %v3030, %v3044
        %v3049 = vmul.f32 %v3032, %v3044
        %v3050 = vld [vmem:[%s9] sm:$0xff]
        %v3051 = vld [vmem:[%s9 + $0x8] sm:$0xff]
        %3053 = vset.pattern.permute.xlu0 0
        %3054 = vperm.xlu0 %3053, %v3050
        %v3055 = vpop.permute.xlu0 %3054
        %3058 = vset.pattern.permute.xlu0 0
        %3059 = vperm.xlu0 %3058, %v3051
        %v3060 = vpop.permute.xlu0 %3059
        %v3062 = vadd.f32 %v3046, %v3055
        %v3063 = vadd.f32 %v3047, %v3055
        %v3064 = vadd.f32 %v3048, %v3060
        %v3065 = vadd.f32 %v3049, %v3060
        %v3066 = vadd.f32 %v3062, %v358
        %v3067 = vadd.f32 %v3063, %v359
        %v3068 = vadd.f32 %v3064, %v360
        %v3069 = vadd.f32 %v3065, %v361
        %3070 = vst [vmem:[%s352] sm:$0xff] %v3066
        %3071 = vst [vmem:[%s352 + $0x8] sm:$0xff] %v3067
        %3072 = vst [vmem:[%s352 + $0x10] sm:$0xff] %v3068
        %3073 = vst [vmem:[%s352 + $0x18] sm:$0xff] %v3069
        %s3074 = sand.u32 %s247, 1
        %s3075 = scalar_lea.sflag [#allocation4], %s3074
        %s3076 = sand.u32 %s247, 1
        %s3077 = smul.addr %s3076, 32
        %s3078 = scalar_lea.vmem [#allocation3], %s3077
        // Predicated region
        $region61: #{tpu_custom_call.1} parent=59 // pred_check
          %p3079 = pneg %p257
        $region62: #{tpu_custom_call.1} parent=59 // pred_check_branch
          %3081 = sbr.rel (%p3079) target = $region64
        $region63: #{tpu_custom_call.1} parent=59 // pred_region
          %s3083 = ssub.s32 512, 512
          %3084 = vsyncadd %s3075, %s3083
          %s3085 = smul.addr %s24, 4
          %s3086 = smul.addr %s3085, 128
          %s3087 = scalar_lea.hbm %s10, %s3086
          %s3088 = sshll.u32 %s3078, 4
          %s3089 = int_to_ptr.vmem [resolvable:$true] %s3088
          %3094 = dma.vmem_to_hbm [thread:$0]  %s3089, 512, %s3087, %s3075, 256, 256, 16
        $region64: #{tpu_custom_call.1} parent=59 // pred_fallthru
          _
      $region60: #{tpu_custom_call.1} parent=5 // pred_fallthru
        _
      %p3095 = scmp.le.s32.totalorder 2, %s19
      // Predicated region
      $region65: #{tpu_custom_call.1} parent=5 // pred_check
        %p3096 = pneg %p3095
      $region66: #{tpu_custom_call.1} parent=5 // pred_check_branch
        %3098 = sbr.rel (%p3096) target = $region68
      $region67: #{tpu_custom_call.1} parent=5 // pred_region
        %s3099 = ssub.s32 %s19, 2
        // Predicated region
        $region69: #{tpu_custom_call.1} parent=67 // pred_check
          %p3100 = pneg %p263
        $region70: #{tpu_custom_call.1} parent=67 // pred_check_branch
          %3102 = sbr.rel (%p3100) target = $region72
        $region71: #{tpu_custom_call.1} parent=67 // pred_region
          %s3103 = sand.u32 %s248, 1
          %s3104 = scalar_lea.sflag [#allocation4], %s3103
          %s3105 = sand.u32 %s248, 1
          %s3106 = smul.addr %s3105, 32
          %s3107 = scalar_lea.vmem [#allocation3], %s3106
          %3108 = dma.done %s3104, 512
        $region72: #{tpu_custom_call.1} parent=67 // pred_fallthru
          _
      $region68: #{tpu_custom_call.1} parent=5 // pred_fallthru
        _
    $region6: #{tpu_custom_call.1} parent=1 // loop_footer
      %s23 = sadd.s32 1, %s19
    $region7: #{tpu_custom_call.1} parent=1 // loop_footer_branch
      %18 = sbr.rel target = $region3
    $region8: #{tpu_custom_call.1} parent=1 // loop_exit
      _
    %3109 = vsyncpa [#allocation4], 1
    %s3110 = scalar_lea.sflag [#allocation4], 1
    %3111 = vsyncpa %s3110, 1

</llo_original>
